<compile_context>
chip_gen: v7x
topology: tpu7x:2x2x1
jax: 0.10.0
libtpu: 0.0.40
codegen_flags: <defaults>
</compile_context>

<pallas_src>
import functools

import jax
import jax.numpy as jnp
from jax.experimental import pallas as pl
from jax.experimental.pallas import tpu as pltpu


_SQRT_HALF = 0.7071067811865476


def _gelu(x):
    # Exact (erf-based) GELU -- matches torch.nn.GELU() default.
    return 0.5 * x * (1.0 + jax.lax.erf(x * _SQRT_HALF))


def _complex_act_real(zr):
    """ComplexAct(GELU, use_phase=True) restricted to the real line.

    gelu(|z|) * exp(i*angle(z)) with real z  ==  copysign(gelu(|zr|), zr)
    (gelu(0) == 0, so the sign convention at 0 is irrelevant).  gelu(|zr|) is
    always >= 0, so copying zr's sign bit with bit ops is exact and avoids a
    compare+select on the VALU.
    """
    a = _gelu(jnp.abs(zr))
    sign = pltpu.bitcast(zr, jnp.uint32) & jnp.uint32(0x80000000)
    return pltpu.bitcast(pltpu.bitcast(a, jnp.uint32) | sign, jnp.float32)


def complex_mlp_kernel(x_ref, w_in_ref, b_in_ref, w_h_ref, b_h_ref,
                       w_out_ref, b_out_ref, out_ref, h_ref, *, use_bf16):
    """One grid step = (batch tile i, hidden layer l).

    Hidden-layer weights arrive one layer per step along the innermost
    ("arbitrary") grid axis; the running activation persists across that axis
    in the h_ref VMEM scratch.
    """
    l = pl.program_id(1)
    n_l = pl.num_programs(1)

    def mm(a, w):
        if use_bf16:
            a = a.astype(jnp.bfloat16)
            w = w.astype(jnp.bfloat16)
        return jnp.dot(a, w, preferred_element_type=jnp.float32)

    # ---- input layer (first layer-step of every batch tile) -----------------
    @pl.when(l == 0)
    def _input_layer():
        z = mm(x_ref[...], w_in_ref[...]) + b_in_ref[...]
        h_ref[...] = _complex_act_real(z)

    # ---- hidden layer l (weights streamed per grid step) --------------------
    z = mm(h_ref[...], w_h_ref[0]) + b_h_ref[0]
    h_ref[...] = _complex_act_real(z)

    # ---- output layer (last layer-step) --------------------------------------
    @pl.when(l == n_l - 1)
    def _output_layer():
        out_ref[...] = (mm(h_ref[...], w_out_ref[...]) + b_out_ref[...])


def _pick_block_b(B):
    """Batch-tile heuristic per TPU generation."""
    try:
        kind = jax.devices()[0].device_kind.lower()
    except Exception:
        kind = ""
    if "v7" in kind:
        # v7x: two TensorCores per chip -> aim for an even number (>= 2) of
        # batch tiles whenever B is big enough to split.
        # TODO(synk): also evaluate pltpu.CORE_PARALLEL on the batch axis.
        if B < 16:
            blk = B
        else:
            n_tiles = 2 * max(1, pl.cdiv(B, 1024))
            blk = pl.cdiv(B, n_tiles)
    else:
        # v5e / v6e: single TensorCore -> extra grid steps only add ~0.35 us
        # each; use the biggest tile that comfortably fits VMEM (512-1024 rows
        # measured sweet spot).
        blk = min(B, 1024)
    if blk < B:
        blk = ((blk + 7) // 8) * 8      # keep sublane dim a multiple of 8
    return max(1, min(blk, B))


def complex_mlp_forward(x, params, *, block_b=None, use_bf16_matmul=False):
    w_in, b_in, w_h, b_h, w_out, b_out = params

    # The real-plane collapse is only valid for strictly real inputs/params.
    for name, a in (("x", x), ("w_in", w_in), ("b_in", b_in), ("w_h", w_h),
                    ("b_h", b_h), ("w_out", w_out), ("b_out", b_out)):
        if jnp.issubdtype(jnp.asarray(a).dtype, jnp.complexfloating):
            raise TypeError(f"{name} must be real-valued: this kernel runs the "
                            "real plane only.")

    B, D_in = x.shape
    L, H, _ = w_h.shape
    O = w_out.shape[1]
    if L == 0:
        # TODO(synk): hidden_size == 0 needs a degenerate (input->output only)
        # kernel; the layer-streaming grid below assumes >= 1 hidden layer.
        raise NotImplementedError("hidden_size must be >= 1")

    if block_b is None:
        block_b = _pick_block_b(B)
    block_b = min(block_b, B)
    nb = pl.cdiv(B, block_b)

    # VMEM budget: one streamed hidden layer (double-buffered), single-buffered
    # invariant in/out weights, activation tiles + headroom.  Cap below the
    # physical VMEM of this generation so Mosaic keeps internal-scratch room.
    streamed = 2 * (H * H + H) * 4
    resident = int(w_in.size + b_in.size + w_out.size + b_out.size) * 4
    act = (2 * block_b * D_in + 2 * block_b * O + block_b * H) * 4
    vmem_bytes = streamed + resident + act + (4 << 20)
    try:
        cap = int(pltpu.get_tpu_info().vmem_capacity_bytes) - (16 << 20)
    except Exception:
        cap = 48 << 20                    # safe on every generation (<= v7x 64 MiB)
    cap = max(cap, 32 << 20)
    vmem_bytes = int(min(max(vmem_bytes, 32 << 20), cap))

    kern = functools.partial(complex_mlp_kernel, use_bf16=use_bf16_matmul)

    def build(single_buffer_invariants):
        if single_buffer_invariants:
            # Grid-invariant operands: constant index_map -> one buffer is
            # enough, the second pipeline buffer is pure VMEM waste.
            inv = lambda shape, imap: pl.BlockSpec(
                shape, imap, pipeline_mode=pl.Buffered(1))
        else:
            inv = lambda shape, imap: pl.BlockSpec(shape, imap)
        return pl.pallas_call(
            kern,
            out_shape=jax.ShapeDtypeStruct((B, O), jnp.float32),
            grid=(nb, L),
            in_specs=[
                pl.BlockSpec((block_b, D_in), lambda i, l: (i, 0)),   # x tile
                inv(w_in.shape, lambda i, l: (0, 0)),                 # resident
                inv(b_in.shape, lambda i, l: (0, 0)),
                pl.BlockSpec((1, H, H), lambda i, l: (l, 0, 0)),      # streamed
                pl.BlockSpec((1, 1, H), lambda i, l: (l, 0, 0)),      # streamed
                inv(w_out.shape, lambda i, l: (0, 0)),                # resident
                inv(b_out.shape, lambda i, l: (0, 0)),
            ],
            out_specs=pl.BlockSpec((block_b, O), lambda i, l: (i, 0)),
            scratch_shapes=[pltpu.VMEM((block_b, H), jnp.float32)],   # activation
            compiler_params=pltpu.CompilerParams(
                dimension_semantics=("parallel", "arbitrary"),
                vmem_limit_bytes=vmem_bytes,
            ),
        )

    try:
        out_r = build(True)(x, w_in, b_in, w_h, b_h, w_out, b_out)
    except Exception:
        # Fallback for jax versions without BlockSpec(pipeline_mode=...).
        out_r = build(False)(x, w_in, b_in, w_h, b_h, w_out, b_out)

    # Imaginary part is structurally zero for real inputs/params; the
    # reference's ~1e-16 residue from exp(i*pi) is far below tolerance.
    return jax.lax.complex(out_r, jnp.zeros_like(out_r))   # complex64


# ------------------------- pure-JAX reference (complex64) --------------------
def ref_forward(x, params):
    w_in, b_in, w_h, b_h, w_out, b_out = params

    def act(z):
        return (_gelu(jnp.abs(z)) * jnp.exp(1j * jnp.angle(z))).astype(jnp.complex64)

    z = x.astype(jnp.complex64) @ w_in.astype(jnp.complex64) + b_in[0]
    z = act(z)
    for l in range(w_h.shape[0]):
        z = act(z @ w_h[l].astype(jnp.complex64) + b_h[l, 0])
    return z @ w_out.astype(jnp.complex64) + b_out[0]


# ------------------------------ parameter init --------------------------------
def init_params(key, input_dim, output_dim, hidden_dim, hidden_size):
    """Deterministic init mimicking torch.nn.Linear (U(-1/sqrt(fan_in), ...))."""
    def linear(k, fan_in, fan_out):
        kw, kb = jax.random.split(k)
        bound = 1.0 / (fan_in ** 0.5)
        w = jax.random.uniform(kw, (fan_in, fan_out), jnp.float32, -bound, bound)
        b = jax.random.uniform(kb, (fan_out,), jnp.float32, -bound, bound)
        return w, b

    keys = jax.random.split(key, hidden_size + 2)
    w_in, b_in = linear(keys[0], input_dim, hidden_dim)
    hw, hb = [], []
    for l in range(hidden_size):
        w, b = linear(keys[1 + l], hidden_dim, hidden_dim)
        hw.append(w)
        hb.append(b)
    w_h = jnp.stack(hw)                               # (L, H, H)
    b_h = jnp.stack(hb)[:, None, :]                   # (L, 1, H)
    w_out, b_out = linear(keys[-1], hidden_dim, output_dim)
    return (w_in, b_in[None, :], w_h, b_h, w_out, b_out[None, :])


if __name__ == "__main__":
    input_dim, output_dim, hidden_dim, hidden_size = 16, 8, 32, 3
    batch = 16

    root = jax.random.PRNGKey(0)
    k_params, k_x = jax.random.split(root)
    params = init_params(k_params, input_dim, output_dim, hidden_dim, hidden_size)
    x = jax.random.normal(k_x, (batch, input_dim), jnp.float32)

    out = complex_mlp_forward(x, params)
    out = jax.block_until_ready(out)

    ref = ref_forward(x, params)
    assert out.shape == (batch, output_dim) and out.dtype == jnp.complex64
    assert jnp.allclose(out.real, ref.real, atol=1e-4, rtol=1e-4)
    assert jnp.allclose(out.imag, ref.imag, atol=1e-4, rtol=1e-4)

    print("KERNEL_OK")
</pallas_src>

<mosaic_0001>
module attributes {stable_mosaic.version = 11 : i64} {
  func.func @complex_mlp_kernel(%arg0: i32, %arg1: i32, %arg2: memref<16x16xf32, #tpu.memory_space<vmem>>, %arg3: memref<16x32xf32, #tpu.memory_space<vmem>>, %arg4: memref<1x32xf32, #tpu.memory_space<vmem>>, %arg5: memref<1x32x32xf32, #tpu.memory_space<vmem>>, %arg6: memref<1x1x32xf32, #tpu.memory_space<vmem>>, %arg7: memref<32x8xf32, #tpu.memory_space<vmem>>, %arg8: memref<1x8xf32, #tpu.memory_space<vmem>>, %arg9: memref<16x8xf32, #tpu.memory_space<vmem>>, %arg10: memref<16x32xf32, #tpu.memory_space<vmem>>) attributes {dimension_semantics = [#tpu.dimension_semantics<parallel>, #tpu.dimension_semantics<arbitrary>], iteration_bounds = array<i64: 1, 3>, scalar_prefetch = 0 : i64, scratch_operands = 1 : i64, tpu.core_type = #tpu.core_type<tc>, window_params = [{transform_indices = @transform_0, window_bounds = array<i64: 16, 16>}, {pipeline_mode = #tpu.pipeline_mode<synchronous>, transform_indices = @transform_1, window_bounds = array<i64: 16, 32>}, {pipeline_mode = #tpu.pipeline_mode<synchronous>, transform_indices = @transform_2, window_bounds = array<i64: 1, 32>}, {transform_indices = @transform_3, window_bounds = array<i64: 1, 32, 32>}, {transform_indices = @transform_4, window_bounds = array<i64: 1, 1, 32>}, {pipeline_mode = #tpu.pipeline_mode<synchronous>, transform_indices = @transform_5, window_bounds = array<i64: 32, 8>}, {pipeline_mode = #tpu.pipeline_mode<synchronous>, transform_indices = @transform_6, window_bounds = array<i64: 1, 8>}, {transform_indices = @transform_7, window_bounds = array<i64: 16, 8>}]} {
    %c0_i32 = arith.constant 0 : i32
    %0 = arith.cmpi eq, %arg1, %c0_i32 : i32
    %1 = arith.extui %0 : i1 to i32
    %c0_i32_0 = arith.constant 0 : i32
    %2 = arith.cmpi ne, %1, %c0_i32_0 : i32
    scf.if %2 {
      %c0_14 = arith.constant 0 : index
      %c0_15 = arith.constant 0 : index
      %30 = vector.load %arg2[%c0_14, %c0_15] : memref<16x16xf32, #tpu.memory_space<vmem>>, vector<16x16xf32>
      %c0_16 = arith.constant 0 : index
      %c0_17 = arith.constant 0 : index
      %31 = vector.load %arg3[%c0_16, %c0_17] : memref<16x32xf32, #tpu.memory_space<vmem>>, vector<16x32xf32>
      %cst_18 = arith.constant dense<0.000000e+00> : vector<16x32xf32>
      %32 = tpu.matmul %30, %31, %cst_18 {dimension_numbers = #tpu.dot_dimension_numbers<[1], [0], [0], [1], [0, 0, 1, 1], [], []>} : vector<16x16xf32>, vector<16x32xf32>, vector<16x32xf32> -> vector<16x32xf32>
      %c0_19 = arith.constant 0 : index
      %c0_20 = arith.constant 0 : index
      %33 = vector.load %arg4[%c0_19, %c0_20] : memref<1x32xf32, #tpu.memory_space<vmem>>, vector<1x32xf32>
      %34 = vector.broadcast %33 : vector<1x32xf32> to vector<16x32xf32>
      %35 = arith.addf %32, %34 : vector<16x32xf32>
      %36 = math.absf %35 : vector<16x32xf32>
      %cst_21 = arith.constant 5.000000e-01 : f32
      %37 = vector.broadcast %cst_21 : f32 to vector<16x32xf32>
      %38 = arith.mulf %37, %36 : vector<16x32xf32>
      %cst_22 = arith.constant 0.707106769 : f32
      %39 = vector.broadcast %cst_22 : f32 to vector<16x32xf32>
      %40 = arith.mulf %36, %39 : vector<16x32xf32>
      %41 = math.erf %40 : vector<16x32xf32>
      %cst_23 = arith.constant 1.000000e+00 : f32
      %42 = vector.broadcast %cst_23 : f32 to vector<16x32xf32>
      %43 = arith.addf %42, %41 : vector<16x32xf32>
      %44 = arith.mulf %38, %43 : vector<16x32xf32>
      %45 = tpu.bitcast %35 : vector<16x32xf32> -> vector<16x32xi32>
      %c-2147483648_i32_24 = arith.constant -2147483648 : i32
      %46 = vector.broadcast %c-2147483648_i32_24 : i32 to vector<16x32xi32>
      %47 = arith.andi %45, %46 : vector<16x32xi32>
      %48 = tpu.bitcast %44 : vector<16x32xf32> -> vector<16x32xi32>
      %49 = arith.ori %48, %47 : vector<16x32xi32>
      %50 = tpu.bitcast %49 : vector<16x32xi32> -> vector<16x32xf32>
      %c0_25 = arith.constant 0 : index
      %c0_26 = arith.constant 0 : index
      %51 = vector.load %arg10[%c0_25, %c0_26] : memref<16x32xf32, #tpu.memory_space<vmem>>, vector<16x32xf32>
      tpu.vector_store %arg10[%c0_25, %c0_26], %50 {strides = array<i32>} : memref<16x32xf32, #tpu.memory_space<vmem>>, vector<16x32xf32>,
    } else {
    }
    %c0 = arith.constant 0 : index
    %c0_1 = arith.constant 0 : index
    %3 = vector.load %arg10[%c0, %c0_1] : memref<16x32xf32, #tpu.memory_space<vmem>>, vector<16x32xf32>
    %c0_2 = arith.constant 0 : index
    %c0_3 = arith.constant 0 : index
    %c0_4 = arith.constant 0 : index
    %4 = vector.load %arg5[%c0_2, %c0_3, %c0_4] : memref<1x32x32xf32, #tpu.memory_space<vmem>>, vector<1x32x32xf32>
    %5 = vector.shape_cast %4 : vector<1x32x32xf32> to vector<32x32xf32>
    %cst = arith.constant dense<0.000000e+00> : vector<16x32xf32>
    %6 = tpu.matmul %3, %5, %cst {dimension_numbers = #tpu.dot_dimension_numbers<[1], [0], [0], [1], [0, 0, 1, 1], [], []>} : vector<16x32xf32>, vector<32x32xf32>, vector<16x32xf32> -> vector<16x32xf32>
    %c0_5 = arith.constant 0 : index
    %c0_6 = arith.constant 0 : index
    %c0_7 = arith.constant 0 : index
    %7 = vector.load %arg6[%c0_5, %c0_6, %c0_7] : memref<1x1x32xf32, #tpu.memory_space<vmem>>, vector<1x1x32xf32>
    %8 = vector.shape_cast %7 : vector<1x1x32xf32> to vector<1x32xf32>
    %9 = vector.broadcast %8 : vector<1x32xf32> to vector<16x32xf32>
    %10 = arith.addf %6, %9 : vector<16x32xf32>
    %11 = math.absf %10 : vector<16x32xf32>
    %cst_8 = arith.constant 5.000000e-01 : f32
    %12 = vector.broadcast %cst_8 : f32 to vector<16x32xf32>
    %13 = arith.mulf %12, %11 : vector<16x32xf32>
    %cst_9 = arith.constant 0.707106769 : f32
    %14 = vector.broadcast %cst_9 : f32 to vector<16x32xf32>
    %15 = arith.mulf %11, %14 : vector<16x32xf32>
    %16 = math.erf %15 : vector<16x32xf32>
    %cst_10 = arith.constant 1.000000e+00 : f32
    %17 = vector.broadcast %cst_10 : f32 to vector<16x32xf32>
    %18 = arith.addf %17, %16 : vector<16x32xf32>
    %19 = arith.mulf %13, %18 : vector<16x32xf32>
    %20 = tpu.bitcast %10 : vector<16x32xf32> -> vector<16x32xi32>
    %c-2147483648_i32 = arith.constant -2147483648 : i32
    %21 = vector.broadcast %c-2147483648_i32 : i32 to vector<16x32xi32>
    %22 = arith.andi %20, %21 : vector<16x32xi32>
    %23 = tpu.bitcast %19 : vector<16x32xf32> -> vector<16x32xi32>
    %24 = arith.ori %23, %22 : vector<16x32xi32>
    %25 = tpu.bitcast %24 : vector<16x32xi32> -> vector<16x32xf32>
    %c0_11 = arith.constant 0 : index
    %c0_12 = arith.constant 0 : index
    %26 = vector.load %arg10[%c0_11, %c0_12] : memref<16x32xf32, #tpu.memory_space<vmem>>, vector<16x32xf32>
    tpu.vector_store %arg10[%c0_11, %c0_12], %25 {strides = array<i32>} : memref<16x32xf32, #tpu.memory_space<vmem>>, vector<16x32xf32>,
    %c2_i32 = arith.constant 2 : i32
    %27 = arith.cmpi eq, %arg1, %c2_i32 : i32
    %28 = arith.extui %27 : i1 to i32
    %c0_i32_13 = arith.constant 0 : i32
    %29 = arith.cmpi ne, %28, %c0_i32_13 : i32
    scf.if %29 {
      %c0_14 = arith.constant 0 : index
      %c0_15 = arith.constant 0 : index
      %30 = vector.load %arg10[%c0_14, %c0_15] : memref<16x32xf32, #tpu.memory_space<vmem>>, vector<16x32xf32>
      %c0_16 = arith.constant 0 : index
      %c0_17 = arith.constant 0 : index
      %31 = vector.load %arg7[%c0_16, %c0_17] : memref<32x8xf32, #tpu.memory_space<vmem>>, vector<32x8xf32>
      %cst_18 = arith.constant dense<0.000000e+00> : vector<16x8xf32>
      %32 = tpu.matmul %30, %31, %cst_18 {dimension_numbers = #tpu.dot_dimension_numbers<[1], [0], [0], [1], [0, 0, 1, 1], [], []>} : vector<16x32xf32>, vector<32x8xf32>, vector<16x8xf32> -> vector<16x8xf32>
      %c0_19 = arith.constant 0 : index
      %c0_20 = arith.constant 0 : index
      %33 = vector.load %arg8[%c0_19, %c0_20] : memref<1x8xf32, #tpu.memory_space<vmem>>, vector<1x8xf32>
      %34 = vector.broadcast %33 : vector<1x8xf32> to vector<16x8xf32>
      %35 = arith.addf %32, %34 : vector<16x8xf32>
      %c0_21 = arith.constant 0 : index
      %c0_22 = arith.constant 0 : index
      %36 = vector.load %arg9[%c0_21, %c0_22] : memref<16x8xf32, #tpu.memory_space<vmem>>, vector<16x8xf32>
      tpu.vector_store %arg9[%c0_21, %c0_22], %35 {strides = array<i32>} : memref<16x8xf32, #tpu.memory_space<vmem>>, vector<16x8xf32>,
    } else {
    }
    return
  }
  func.func @transform_0(%arg0: i32, %arg1: i32) -> (i32, i32) {
    %c0_i32 = arith.constant 0 : i32
    %c0_i32_0 = arith.constant 0 : i32
    return %arg0, %c0_i32 : i32, i32
  }
  func.func @transform_1(%arg0: i32, %arg1: i32) -> (i32, i32) {
    %c0_i32 = arith.constant 0 : i32
    %c0_i32_0 = arith.constant 0 : i32
    %c0_i32_1 = arith.constant 0 : i32
    return %c0_i32, %c0_i32_0 : i32, i32
  }
  func.func @transform_2(%arg0: i32, %arg1: i32) -> (i32, i32) {
    %c0_i32 = arith.constant 0 : i32
    %c0_i32_0 = arith.constant 0 : i32
    %c0_i32_1 = arith.constant 0 : i32
    return %c0_i32, %c0_i32_0 : i32, i32
  }
  func.func @transform_3(%arg0: i32, %arg1: i32) -> (i32, i32, i32) {
    %c0_i32 = arith.constant 0 : i32
    %c0_i32_0 = arith.constant 0 : i32
    %c0_i32_1 = arith.constant 0 : i32
    return %arg1, %c0_i32, %c0_i32_0 : i32, i32, i32
  }
  func.func @transform_4(%arg0: i32, %arg1: i32) -> (i32, i32, i32) {
    %c0_i32 = arith.constant 0 : i32
    %c0_i32_0 = arith.constant 0 : i32
    %c0_i32_1 = arith.constant 0 : i32
    return %arg1, %c0_i32, %c0_i32_0 : i32, i32, i32
  }
  func.func @transform_5(%arg0: i32, %arg1: i32) -> (i32, i32) {
    %c0_i32 = arith.constant 0 : i32
    %c0_i32_0 = arith.constant 0 : i32
    %c0_i32_1 = arith.constant 0 : i32
    return %c0_i32, %c0_i32_0 : i32, i32
  }
  func.func @transform_6(%arg0: i32, %arg1: i32) -> (i32, i32) {
    %c0_i32 = arith.constant 0 : i32
    %c0_i32_0 = arith.constant 0 : i32
    %c0_i32_1 = arith.constant 0 : i32
    return %c0_i32, %c0_i32_0 : i32, i32
  }
  func.func @transform_7(%arg0: i32, %arg1: i32) -> (i32, i32) {
    %c0_i32 = arith.constant 0 : i32
    %c0_i32_0 = arith.constant 0 : i32
    return %arg0, %c0_i32 : i32, i32
  }
}

module attributes {stable_mosaic.version = 11 : i64} {
  func.func @complex_mlp_kernel(%arg0: i32, %arg1: i32, %arg2: memref<16x16xf32, #tpu.memory_space<vmem>>, %arg3: memref<16x32xf32, #tpu.memory_space<vmem>>, %arg4: memref<1x32xf32, #tpu.memory_space<vmem>>, %arg5: memref<1x32x32xf32, #tpu.memory_space<vmem>>, %arg6: memref<1x1x32xf32, #tpu.memory_space<vmem>>, %arg7: memref<32x8xf32, #tpu.memory_space<vmem>>, %arg8: memref<1x8xf32, #tpu.memory_space<vmem>>, %arg9: memref<16x8xf32, #tpu.memory_space<vmem>>, %arg10: memref<16x32xf32, #tpu.memory_space<vmem>>) attributes {dimension_semantics = [#tpu.dimension_semantics<parallel>, #tpu.dimension_semantics<arbitrary>], iteration_bounds = array<i64: 1, 3>, scalar_prefetch = 0 : i64, scratch_operands = 1 : i64, tpu.core_type = #tpu.core_type<tc>, window_params = [{transform_indices = @transform_0, window_bounds = array<i64: 16, 16>}, {pipeline_mode = #tpu.pipeline_mode<synchronous>, transform_indices = @transform_1, window_bounds = array<i64: 16, 32>}, {pipeline_mode = #tpu.pipeline_mode<synchronous>, transform_indices = @transform_2, window_bounds = array<i64: 1, 32>}, {transform_indices = @transform_3, window_bounds = array<i64: 1, 32, 32>}, {transform_indices = @transform_4, window_bounds = array<i64: 1, 1, 32>}, {pipeline_mode = #tpu.pipeline_mode<synchronous>, transform_indices = @transform_5, window_bounds = array<i64: 32, 8>}, {pipeline_mode = #tpu.pipeline_mode<synchronous>, transform_indices = @transform_6, window_bounds = array<i64: 1, 8>}, {transform_indices = @transform_7, window_bounds = array<i64: 16, 8>}]} {
    %c0_i32 = arith.constant 0 : i32
    %0 = arith.cmpi eq, %arg1, %c0_i32 : i32
    %1 = arith.extui %0 : i1 to i32
    %c0_i32_0 = arith.constant 0 : i32
    %2 = arith.cmpi ne, %1, %c0_i32_0 : i32
    scf.if %2 {
      %c0_14 = arith.constant 0 : index
      %c0_15 = arith.constant 0 : index
      %30 = vector.load %arg2[%c0_14, %c0_15] : memref<16x16xf32, #tpu.memory_space<vmem>>, vector<16x16xf32>
      %c0_16 = arith.constant 0 : index
      %c0_17 = arith.constant 0 : index
      %31 = vector.load %arg3[%c0_16, %c0_17] : memref<16x32xf32, #tpu.memory_space<vmem>>, vector<16x32xf32>
      %cst_18 = arith.constant dense<0.000000e+00> : vector<16x32xf32>
      %32 = tpu.matmul %30, %31, %cst_18 {dimension_numbers = #tpu.dot_dimension_numbers<[1], [0], [0], [1], [0, 0, 1, 1], [], []>} : vector<16x16xf32>, vector<16x32xf32>, vector<16x32xf32> -> vector<16x32xf32>
      %c0_19 = arith.constant 0 : index
      %c0_20 = arith.constant 0 : index
      %33 = vector.load %arg4[%c0_19, %c0_20] : memref<1x32xf32, #tpu.memory_space<vmem>>, vector<1x32xf32>
      %34 = vector.broadcast %33 : vector<1x32xf32> to vector<16x32xf32>
      %35 = arith.addf %32, %34 : vector<16x32xf32>
      %36 = math.absf %35 : vector<16x32xf32>
      %cst_21 = arith.constant 5.000000e-01 : f32
      %37 = vector.broadcast %cst_21 : f32 to vector<16x32xf32>
      %38 = arith.mulf %37, %36 : vector<16x32xf32>
      %cst_22 = arith.constant 0.707106769 : f32
      %39 = vector.broadcast %cst_22 : f32 to vector<16x32xf32>
      %40 = arith.mulf %36, %39 : vector<16x32xf32>
      %41 = math.erf %40 : vector<16x32xf32>
      %cst_23 = arith.constant 1.000000e+00 : f32
      %42 = vector.broadcast %cst_23 : f32 to vector<16x32xf32>
      %43 = arith.addf %42, %41 : vector<16x32xf32>
      %44 = arith.mulf %38, %43 : vector<16x32xf32>
      %45 = tpu.bitcast %35 : vector<16x32xf32> -> vector<16x32xi32>
      %c-2147483648_i32_24 = arith.constant -2147483648 : i32
      %46 = vector.broadcast %c-2147483648_i32_24 : i32 to vector<16x32xi32>
      %47 = arith.andi %45, %46 : vector<16x32xi32>
      %48 = tpu.bitcast %44 : vector<16x32xf32> -> vector<16x32xi32>
      %49 = arith.ori %48, %47 : vector<16x32xi32>
      %50 = tpu.bitcast %49 : vector<16x32xi32> -> vector<16x32xf32>
      %c0_25 = arith.constant 0 : index
      %c0_26 = arith.constant 0 : index
      %51 = vector.load %arg10[%c0_25, %c0_26] : memref<16x32xf32, #tpu.memory_space<vmem>>, vector<16x32xf32>
      tpu.vector_store %arg10[%c0_25, %c0_26], %50 {strides = array<i32>} : memref<16x32xf32, #tpu.memory_space<vmem>>, vector<16x32xf32>,
    } else {
    }
    %c0 = arith.constant 0 : index
    %c0_1 = arith.constant 0 : index
    %3 = vector.load %arg10[%c0, %c0_1] : memref<16x32xf32, #tpu.memory_space<vmem>>, vector<16x32xf32>
    %c0_2 = arith.constant 0 : index
    %c0_3 = arith.constant 0 : index
    %c0_4 = arith.constant 0 : index
    %4 = vector.load %arg5[%c0_2, %c0_3, %c0_4] : memref<1x32x32xf32, #tpu.memory_space<vmem>>, vector<1x32x32xf32>
    %5 = vector.shape_cast %4 : vector<1x32x32xf32> to vector<32x32xf32>
    %cst = arith.constant dense<0.000000e+00> : vector<16x32xf32>
    %6 = tpu.matmul %3, %5, %cst {dimension_numbers = #tpu.dot_dimension_numbers<[1], [0], [0], [1], [0, 0, 1, 1], [], []>} : vector<16x32xf32>, vector<32x32xf32>, vector<16x32xf32> -> vector<16x32xf32>
    %c0_5 = arith.constant 0 : index
    %c0_6 = arith.constant 0 : index
    %c0_7 = arith.constant 0 : index
    %7 = vector.load %arg6[%c0_5, %c0_6, %c0_7] : memref<1x1x32xf32, #tpu.memory_space<vmem>>, vector<1x1x32xf32>
    %8 = vector.shape_cast %7 : vector<1x1x32xf32> to vector<1x32xf32>
    %9 = vector.broadcast %8 : vector<1x32xf32> to vector<16x32xf32>
    %10 = arith.addf %6, %9 : vector<16x32xf32>
    %11 = math.absf %10 : vector<16x32xf32>
    %cst_8 = arith.constant 5.000000e-01 : f32
    %12 = vector.broadcast %cst_8 : f32 to vector<16x32xf32>
    %13 = arith.mulf %12, %11 : vector<16x32xf32>
    %cst_9 = arith.constant 0.707106769 : f32
    %14 = vector.broadcast %cst_9 : f32 to vector<16x32xf32>
    %15 = arith.mulf %11, %14 : vector<16x32xf32>
    %16 = math.erf %15 : vector<16x32xf32>
    %cst_10 = arith.constant 1.000000e+00 : f32
    %17 = vector.broadcast %cst_10 : f32 to vector<16x32xf32>
    %18 = arith.addf %17, %16 : vector<16x32xf32>
    %19 = arith.mulf %13, %18 : vector<16x32xf32>
    %20 = tpu.bitcast %10 : vector<16x32xf32> -> vector<16x32xi32>
    %c-2147483648_i32 = arith.constant -2147483648 : i32
    %21 = vector.broadcast %c-2147483648_i32 : i32 to vector<16x32xi32>
    %22 = arith.andi %20, %21 : vector<16x32xi32>
    %23 = tpu.bitcast %19 : vector<16x32xf32> -> vector<16x32xi32>
    %24 = arith.ori %23, %22 : vector<16x32xi32>
    %25 = tpu.bitcast %24 : vector<16x32xi32> -> vector<16x32xf32>
    %c0_11 = arith.constant 0 : index
    %c0_12 = arith.constant 0 : index
    %26 = vector.load %arg10[%c0_11, %c0_12] : memref<16x32xf32, #tpu.memory_space<vmem>>, vector<16x32xf32>
    tpu.vector_store %arg10[%c0_11, %c0_12], %25 {strides = array<i32>} : memref<16x32xf32, #tpu.memory_space<vmem>>, vector<16x32xf32>,
    %c2_i32 = arith.constant 2 : i32
    %27 = arith.cmpi eq, %arg1, %c2_i32 : i32
    %28 = arith.extui %27 : i1 to i32
    %c0_i32_13 = arith.constant 0 : i32
    %29 = arith.cmpi ne, %28, %c0_i32_13 : i32
    scf.if %29 {
      %c0_14 = arith.constant 0 : index
      %c0_15 = arith.constant 0 : index
      %30 = vector.load %arg10[%c0_14, %c0_15] : memref<16x32xf32, #tpu.memory_space<vmem>>, vector<16x32xf32>
      %c0_16 = arith.constant 0 : index
      %c0_17 = arith.constant 0 : index
      %31 = vector.load %arg7[%c0_16, %c0_17] : memref<32x8xf32, #tpu.memory_space<vmem>>, vector<32x8xf32>
      %cst_18 = arith.constant dense<0.000000e+00> : vector<16x8xf32>
      %32 = tpu.matmul %30, %31, %cst_18 {dimension_numbers = #tpu.dot_dimension_numbers<[1], [0], [0], [1], [0, 0, 1, 1], [], []>} : vector<16x32xf32>, vector<32x8xf32>, vector<16x8xf32> -> vector<16x8xf32>
      %c0_19 = arith.constant 0 : index
      %c0_20 = arith.constant 0 : index
      %33 = vector.load %arg8[%c0_19, %c0_20] : memref<1x8xf32, #tpu.memory_space<vmem>>, vector<1x8xf32>
      %34 = vector.broadcast %33 : vector<1x8xf32> to vector<16x8xf32>
      %35 = arith.addf %32, %34 : vector<16x8xf32>
      %c0_21 = arith.constant 0 : index
      %c0_22 = arith.constant 0 : index
      %36 = vector.load %arg9[%c0_21, %c0_22] : memref<16x8xf32, #tpu.memory_space<vmem>>, vector<16x8xf32>
      tpu.vector_store %arg9[%c0_21, %c0_22], %35 {strides = array<i32>} : memref<16x8xf32, #tpu.memory_space<vmem>>, vector<16x8xf32>,
    } else {
    }
    return
  }
  func.func @transform_0(%arg0: i32, %arg1: i32) -> (i32, i32) {
    %c0_i32 = arith.constant 0 : i32
    %c0_i32_0 = arith.constant 0 : i32
    return %arg0, %c0_i32 : i32, i32
  }
  func.func @transform_1(%arg0: i32, %arg1: i32) -> (i32, i32) {
    %c0_i32 = arith.constant 0 : i32
    %c0_i32_0 = arith.constant 0 : i32
    %c0_i32_1 = arith.constant 0 : i32
    return %c0_i32, %c0_i32_0 : i32, i32
  }
  func.func @transform_2(%arg0: i32, %arg1: i32) -> (i32, i32) {
    %c0_i32 = arith.constant 0 : i32
    %c0_i32_0 = arith.constant 0 : i32
    %c0_i32_1 = arith.constant 0 : i32
    return %c0_i32, %c0_i32_0 : i32, i32
  }
  func.func @transform_3(%arg0: i32, %arg1: i32) -> (i32, i32, i32) {
    %c0_i32 = arith.constant 0 : i32
    %c0_i32_0 = arith.constant 0 : i32
    %c0_i32_1 = arith.constant 0 : i32
    return %arg1, %c0_i32, %c0_i32_0 : i32, i32, i32
  }
  func.func @transform_4(%arg0: i32, %arg1: i32) -> (i32, i32, i32) {
    %c0_i32 = arith.constant 0 : i32
    %c0_i32_0 = arith.constant 0 : i32
    %c0_i32_1 = arith.constant 0 : i32
    return %arg1, %c0_i32, %c0_i32_0 : i32, i32, i32
  }
  func.func @transform_5(%arg0: i32, %arg1: i32) -> (i32, i32) {
    %c0_i32 = arith.constant 0 : i32
    %c0_i32_0 = arith.constant 0 : i32
    %c0_i32_1 = arith.constant 0 : i32
    return %c0_i32, %c0_i32_0 : i32, i32
  }
  func.func @transform_6(%arg0: i32, %arg1: i32) -> (i32, i32) {
    %c0_i32 = arith.constant 0 : i32
    %c0_i32_0 = arith.constant 0 : i32
    %c0_i32_1 = arith.constant 0 : i32
    return %c0_i32, %c0_i32_0 : i32, i32
  }
  func.func @transform_7(%arg0: i32, %arg1: i32) -> (i32, i32) {
    %c0_i32 = arith.constant 0 : i32
    %c0_i32_0 = arith.constant 0 : i32
    return %arg0, %c0_i32 : i32, i32
  }
}

</mosaic_0001>

<llo_original>
// kernel: tpu_custom_call.1
$region0: #{tpu_custom_call.1}
  #allocation0 [shape = 'u32[]', space=smem, size = 0x4, offset = 0x4, fixed_abs, tag = 'smem constant byte address 0x4 - core index']
  #allocation1 [shape = 'u32[144,128]{1,0:T(1,128)}', space=vmem, size = 0x12000, scoped, tag = 'internal scratch']
  #allocation2 [shape = 'f32[16,32]{1,0:T(8,128)}', space=vmem, size = 0x2000, scoped, tag = 'scratch operand']
  %s0 = inlined_call_operand.vmem [shape: f32[16,16], index: 0, kind: input, shape index: {}]
  %s1 = inlined_call_operand.vmem [shape: f32[16,32], index: 1, kind: input, shape index: {}]
  %s2 = inlined_call_operand.vmem [shape: f32[1,32], index: 2, kind: input, shape index: {}]
  %s3 = inlined_call_operand.hbm [shape: f32[3,32,32], index: 3, kind: input, shape index: {}]
  %s4 = inlined_call_operand.vmem [shape: f32[3,1,32], index: 4, kind: input, shape index: {}]
  %s5 = inlined_call_operand.vmem [shape: f32[32,8], index: 5, kind: input, shape index: {}]
  %s6 = inlined_call_operand.vmem [shape: f32[1,8], index: 6, kind: input, shape index: {}]
  %s7 = inlined_call_operand.vmem [shape: f32[16,8], index: 7, kind: output, shape index: {}]
  %s8 = sld [smem:[#allocation0]]
  $region73: #{tpu_custom_call.1} parent=0
    _
  %s10 = ssub.s32 1, %s8
  %s11 = scalar_select 0, %s10, %s8
  $region1: #{tpu_custom_call.1} parent=0
    #allocation3 [shape = 'u8[32768]{0}', space=vmem, size = 0x8000, scoped, tag = 'input window, operand 3']
    #allocation4 [shape = 's32[2]{0}', space=sflag, size = 0x8, scoped, tag = 'scoped memory for tpu_custom_call.1']
    %12 = vsyncpa [#allocation4], 0
    %s13 = scalar_lea.sflag [#allocation4], 1
    %14 = vsyncpa %s13, 0
    loop: start=0, step=1, limit=5
    $region2: #{tpu_custom_call.1} parent=1 // loop_pre_header
      _
    $region3: #{tpu_custom_call.1} parent=1 // loop_header
      %s16 = sphi 0, %s20
      %p17 = scmp.ge.s32.totalorder %s16, 5
      %s23 = sphi 0, %s35
      %s24 = sphi 0, %s31
      %s25 = sphi 0, %s23
      %s26 = sphi 0, %s24
      %s27 = sphi 0, %s25
      %s28 = sphi 0, %s26
      %s38 = sphi 0, %s40
      %s41 = sphi 0, %s38
      %s42 = sphi 0, %s41
      %s58 = sphi 0, %s42
      %s62 = sphi 0, %s62
      %s64 = sphi 0, %s62
      %s65 = sphi 0, %s64
      %s79 = sphi 0, %s65
      %s83 = sphi 0, %s83
      %s85 = sphi 0, %s83
      %s86 = sphi 0, %s85
      %s100 = sphi 0, %s86
      %s106 = sphi 0, %s108
      %s109 = sphi 0, %s106
      %s110 = sphi 0, %s109
      %s126 = sphi 0, %s110
      %s132 = sphi 0, %s134
      %s135 = sphi 0, %s132
      %s136 = sphi 0, %s135
      %s152 = sphi 0, %s136
      %s156 = sphi 0, %s156
      %s158 = sphi 0, %s156
      %s159 = sphi 0, %s158
      %s173 = sphi 0, %s159
      %s177 = sphi 0, %s177
      %s179 = sphi 0, %s177
      %s180 = sphi 0, %s179
      %s194 = sphi 0, %s180
      %s200 = sphi 0, %s202
      %s203 = sphi 0, %s200
      %s204 = sphi 0, %s203
      %s220 = sphi 0, %s204
    $region4: #{tpu_custom_call.1} parent=1 // loop_header_branch
      %19 = sbr.rel (%p17) target = $region8
    $region5: #{tpu_custom_call.1} parent=1 // loop_body
      %s21 = ssub.s32 %s16, 1
      %s22 = ssub.s32 %s16, 2
      %s29 = sadd.s32 1, %s24
      %p30 = scmp.ge.s32.totalorder %s29, 3
      %s31 = scalar_select %p30, 0, %s29
      %s32 = sadd.s32 1, %s23
      %s33 = scalar_select %p30, %s32, %s23
      %p34 = scmp.ge.s32.totalorder %s33, 1
      %s35 = scalar_select %p34, 0, %s33
      %s36 = ssub.s32 %s23, %s35
      %p37 = scmp.eq.s32.totalorder %s36, 0
      %s39 = sadd.s32 %s38, 1
      %s40 = scalar_select %p37, %s38, %s39
      %p43 = pneg %p37
      %p44 = scmp.eq.s32.totalorder %s16, 2
      %p45 = por %p43, %p44
      %p46 = scmp.ne.s32.totalorder %s38, %s41
      %p47 = scmp.eq.s32.totalorder %s16, 0
      %p48 = por %p46, %p47
      %p49 = scmp.ne.s32.totalorder %s38, %s41
      %p50 = scmp.eq.s32.totalorder %s21, 2
      %p51 = por %p49, %p50
      %p52 = scmp.ne.s32.totalorder %s41, %s42
      %p53 = scmp.eq.s32.totalorder %s21, 0
      %p54 = por %p52, %p53
      %p55 = scmp.ne.s32.totalorder %s41, %s42
      %p56 = scmp.eq.s32.totalorder %s22, 2
      %p57 = por %p55, %p56
      %p59 = scmp.ne.s32.totalorder %s42, %s58
      %p60 = scmp.eq.s32.totalorder %s22, 0
      %p61 = por %p59, %p60
      %s63 = sadd.s32 %s62, 1
      %p66 = scmp.eq.s32.totalorder %s16, 2
      %p67 = scmp.ne.s32.totalorder %s62, %s64
      %p68 = scmp.eq.s32.totalorder %s16, 0
      %p69 = por %p67, %p68
      %p70 = scmp.ne.s32.totalorder %s62, %s64
      %p71 = scmp.eq.s32.totalorder %s21, 2
      %p72 = por %p70, %p71
      %p73 = scmp.ne.s32.totalorder %s64, %s65
      %p74 = scmp.eq.s32.totalorder %s21, 0
      %p75 = por %p73, %p74
      %p76 = scmp.ne.s32.totalorder %s64, %s65
      %p77 = scmp.eq.s32.totalorder %s22, 2
      %p78 = por %p76, %p77
      %p80 = scmp.ne.s32.totalorder %s65, %s79
      %p81 = scmp.eq.s32.totalorder %s22, 0
      %p82 = por %p80, %p81
      %s84 = sadd.s32 %s83, 1
      %p87 = scmp.eq.s32.totalorder %s16, 2
      %p88 = scmp.ne.s32.totalorder %s83, %s85
      %p89 = scmp.eq.s32.totalorder %s16, 0
      %p90 = por %p88, %p89
      %p91 = scmp.ne.s32.totalorder %s83, %s85
      %p92 = scmp.eq.s32.totalorder %s21, 2
      %p93 = por %p91, %p92
      %p94 = scmp.ne.s32.totalorder %s85, %s86
      %p95 = scmp.eq.s32.totalorder %s21, 0
      %p96 = por %p94, %p95
      %p97 = scmp.ne.s32.totalorder %s85, %s86
      %p98 = scmp.eq.s32.totalorder %s22, 2
      %p99 = por %p97, %p98
      %p101 = scmp.ne.s32.totalorder %s86, %s100
      %p102 = scmp.eq.s32.totalorder %s22, 0
      %p103 = por %p101, %p102
      %s104 = ssub.s32 %s24, %s31
      %p105 = scmp.eq.s32.totalorder %s104, 0
      %s107 = sadd.s32 %s106, 1
      %s108 = scalar_select %p105, %s106, %s107
      %p111 = pneg %p105
      %p112 = scmp.eq.s32.totalorder %s16, 2
      %p113 = por %p111, %p112
      %p114 = scmp.ne.s32.totalorder %s106, %s109
      %p115 = scmp.eq.s32.totalorder %s16, 0
      %p116 = por %p114, %p115
      %p117 = scmp.ne.s32.totalorder %s106, %s109
      %p118 = scmp.eq.s32.totalorder %s21, 2
      %p119 = por %p117, %p118
      %p120 = scmp.ne.s32.totalorder %s109, %s110
      %p121 = scmp.eq.s32.totalorder %s21, 0
      %p122 = por %p120, %p121
      %p123 = scmp.ne.s32.totalorder %s109, %s110
      %p124 = scmp.eq.s32.totalorder %s22, 2
      %p125 = por %p123, %p124
      %p127 = scmp.ne.s32.totalorder %s110, %s126
      %p128 = scmp.eq.s32.totalorder %s22, 0
      %p129 = por %p127, %p128
      %s130 = ssub.s32 %s24, %s31
      %p131 = scmp.eq.s32.totalorder %s130, 0
      %s133 = sadd.s32 %s132, 1
      %s134 = scalar_select %p131, %s132, %s133
      %p137 = pneg %p131
      %p138 = scmp.eq.s32.totalorder %s16, 2
      %p139 = por %p137, %p138
      %p140 = scmp.ne.s32.totalorder %s132, %s135
      %p141 = scmp.eq.s32.totalorder %s16, 0
      %p142 = por %p140, %p141
      %p143 = scmp.ne.s32.totalorder %s132, %s135
      %p144 = scmp.eq.s32.totalorder %s21, 2
      %p145 = por %p143, %p144
      %p146 = scmp.ne.s32.totalorder %s135, %s136
      %p147 = scmp.eq.s32.totalorder %s21, 0
      %p148 = por %p146, %p147
      %p149 = scmp.ne.s32.totalorder %s135, %s136
      %p150 = scmp.eq.s32.totalorder %s22, 2
      %p151 = por %p149, %p150
      %p153 = scmp.ne.s32.totalorder %s136, %s152
      %p154 = scmp.eq.s32.totalorder %s22, 0
      %p155 = por %p153, %p154
      %s157 = sadd.s32 %s156, 1
      %p160 = scmp.eq.s32.totalorder %s16, 2
      %p161 = scmp.ne.s32.totalorder %s156, %s158
      %p162 = scmp.eq.s32.totalorder %s16, 0
      %p163 = por %p161, %p162
      %p164 = scmp.ne.s32.totalorder %s156, %s158
      %p165 = scmp.eq.s32.totalorder %s21, 2
      %p166 = por %p164, %p165
      %p167 = scmp.ne.s32.totalorder %s158, %s159
      %p168 = scmp.eq.s32.totalorder %s21, 0
      %p169 = por %p167, %p168
      %p170 = scmp.ne.s32.totalorder %s158, %s159
      %p171 = scmp.eq.s32.totalorder %s22, 2
      %p172 = por %p170, %p171
      %p174 = scmp.ne.s32.totalorder %s159, %s173
      %p175 = scmp.eq.s32.totalorder %s22, 0
      %p176 = por %p174, %p175
      %s178 = sadd.s32 %s177, 1
      %p181 = scmp.eq.s32.totalorder %s16, 2
      %p182 = scmp.ne.s32.totalorder %s177, %s179
      %p183 = scmp.eq.s32.totalorder %s16, 0
      %p184 = por %p182, %p183
      %p185 = scmp.ne.s32.totalorder %s177, %s179
      %p186 = scmp.eq.s32.totalorder %s21, 2
      %p187 = por %p185, %p186
      %p188 = scmp.ne.s32.totalorder %s179, %s180
      %p189 = scmp.eq.s32.totalorder %s21, 0
      %p190 = por %p188, %p189
      %p191 = scmp.ne.s32.totalorder %s179, %s180
      %p192 = scmp.eq.s32.totalorder %s22, 2
      %p193 = por %p191, %p192
      %p195 = scmp.ne.s32.totalorder %s180, %s194
      %p196 = scmp.eq.s32.totalorder %s22, 0
      %p197 = por %p195, %p196
      %s198 = ssub.s32 %s23, %s35
      %p199 = scmp.eq.s32.totalorder %s198, 0
      %s201 = sadd.s32 %s200, 1
      %s202 = scalar_select %p199, %s200, %s201
      %p205 = pneg %p199
      %p206 = scmp.eq.s32.totalorder %s16, 2
      %p207 = por %p205, %p206
      %p208 = scmp.ne.s32.totalorder %s200, %s203
      %p209 = scmp.eq.s32.totalorder %s16, 0
      %p210 = por %p208, %p209
      %p211 = scmp.ne.s32.totalorder %s200, %s203
      %p212 = scmp.eq.s32.totalorder %s21, 2
      %p213 = por %p211, %p212
      %p214 = scmp.ne.s32.totalorder %s203, %s204
      %p215 = scmp.eq.s32.totalorder %s21, 0
      %p216 = por %p214, %p215
      %p217 = scmp.ne.s32.totalorder %s203, %s204
      %p218 = scmp.eq.s32.totalorder %s22, 2
      %p219 = por %p217, %p218
      %p221 = scmp.ne.s32.totalorder %s204, %s220
      %p222 = scmp.eq.s32.totalorder %s22, 0
      %p223 = por %p221, %p222
      %p224 = scmp.le.s32.totalorder 1, %s16
      %p225 = scmp.lt.s32.totalorder %s16, 4
      %p226 = pnand %p224, %p225
      %p227 = pneg %p226
      // Predicated region
      $region9: #{tpu_custom_call.1} parent=5 // pred_check
        _
      $region10: #{tpu_custom_call.1} parent=5 // pred_check_branch
        %229 = sbr.rel (%p226) target = $region12
      $region11: #{tpu_custom_call.1} parent=5 // pred_region
        %s230 = ssub.s32 %s16, 1
        // Predicated region
        $region13: #{tpu_custom_call.1} parent=11 // pred_check
          %p231 = pneg %p54
        $region14: #{tpu_custom_call.1} parent=11 // pred_check_branch
          %233 = sbr.rel (%p231) target = $region16
        $region15: #{tpu_custom_call.1} parent=11 // pred_region
          %s234 = smul.u32 2, %s25
          %p235 = scmp.lt.s32.totalorder %s234, 1
          %s236 = scalar_select %p235, %s234, 1
          %s237 = smul.addr %s236, 8
          %s238 = scalar_lea.vmem %s0, %s237
          %s239 = smul.u32 2, %s25
        $region16: #{tpu_custom_call.1} parent=11 // pred_fallthru
          _
        // Predicated region
        $region17: #{tpu_custom_call.1} parent=11 // pred_check
          %p240 = pneg %p75
        $region18: #{tpu_custom_call.1} parent=11 // pred_check_branch
          %242 = sbr.rel (%p240) target = $region20
        $region19: #{tpu_custom_call.1} parent=11 // pred_region
          _
        $region20: #{tpu_custom_call.1} parent=11 // pred_fallthru
          _
        // Predicated region
        $region21: #{tpu_custom_call.1} parent=11 // pred_check
          %p243 = pneg %p96
        $region22: #{tpu_custom_call.1} parent=11 // pred_check_branch
          %245 = sbr.rel (%p243) target = $region24
        $region23: #{tpu_custom_call.1} parent=11 // pred_region
          _
        $region24: #{tpu_custom_call.1} parent=11 // pred_fallthru
          _
        // Predicated region
        $region25: #{tpu_custom_call.1} parent=11 // pred_check
          %p246 = pneg %p169
        $region26: #{tpu_custom_call.1} parent=11 // pred_check_branch
          %248 = sbr.rel (%p246) target = $region28
        $region27: #{tpu_custom_call.1} parent=11 // pred_region
          _
        $region28: #{tpu_custom_call.1} parent=11 // pred_fallthru
          _
        // Predicated region
        $region29: #{tpu_custom_call.1} parent=11 // pred_check
          %p249 = pneg %p190
        $region30: #{tpu_custom_call.1} parent=11 // pred_check_branch
          %251 = sbr.rel (%p249) target = $region32
        $region31: #{tpu_custom_call.1} parent=11 // pred_region
          _
        $region32: #{tpu_custom_call.1} parent=11 // pred_fallthru
          _
      $region12: #{tpu_custom_call.1} parent=5 // pred_fallthru
        _
      %p252 = scmp.lt.s32.totalorder %s16, 3
      // Predicated region
      $region33: #{tpu_custom_call.1} parent=5 // pred_check
        %p253 = pneg %p252
      $region34: #{tpu_custom_call.1} parent=5 // pred_check_branch
        %255 = sbr.rel (%p253) target = $region36
      $region35: #{tpu_custom_call.1} parent=5 // pred_region
        // Predicated region
        $region37: #{tpu_custom_call.1} parent=35 // pred_check
          %p256 = pneg %p116
        $region38: #{tpu_custom_call.1} parent=35 // pred_check_branch
          %258 = sbr.rel (%p256) target = $region40
        $region39: #{tpu_custom_call.1} parent=35 // pred_region
          %s259 = sand.u32 %s106, 1
          %s260 = scalar_lea.sflag [#allocation4], %s259
          %s261 = sand.u32 %s106, 1
          %s262 = smul.addr %s261, 32
          %s263 = scalar_lea.vmem [#allocation3], %s262
          %s265 = ssub.s32 512, 512
          %266 = vsyncadd %s260, %s265
          %s267 = smul.addr %s24, 4
          %s268 = smul.addr %s267, 128
          %s269 = scalar_lea.hbm %s3, %s268
          %s270 = sshll.u32 %s263, 4
          %s271 = int_to_ptr.vmem [resolvable:$true] %s270
          %276 = dma.hbm_to_vmem [thread:$0]  %s269, 512, %s271, %s260, 128, 128, 8
        $region40: #{tpu_custom_call.1} parent=35 // pred_fallthru
          _
        // Predicated region
        $region41: #{tpu_custom_call.1} parent=35 // pred_check
          %p277 = pneg %p142
        $region42: #{tpu_custom_call.1} parent=35 // pred_check_branch
          %279 = sbr.rel (%p277) target = $region44
        $region43: #{tpu_custom_call.1} parent=35 // pred_region
          %p280 = scmp.lt.s32.totalorder %s24, 2
          %s281 = scalar_select %p280, %s24, 2
          %s282 = scalar_lea.vmem %s4, %s281
        $region44: #{tpu_custom_call.1} parent=35 // pred_fallthru
          _
      $region36: #{tpu_custom_call.1} parent=5 // pred_fallthru
        _
      %p283 = scmp.le.s32.totalorder 1, %s16
      %p284 = scmp.lt.s32.totalorder %s16, 4
      %p285 = pnand %p283, %p284
      %p286 = pneg %p285
      // Predicated region
      $region45: #{tpu_custom_call.1} parent=5 // pred_check
        _
      $region46: #{tpu_custom_call.1} parent=5 // pred_check_branch
        %288 = sbr.rel (%p285) target = $region48
      $region47: #{tpu_custom_call.1} parent=5 // pred_region
        %s289 = ssub.s32 %s16, 1
        %s290 = sand.u32 %s109, 1
        %s291 = scalar_lea.sflag [#allocation4], %s290
        %s292 = sand.u32 %s109, 1
        %s293 = smul.addr %s292, 32
        %s294 = scalar_lea.vmem [#allocation3], %s293
        // Predicated region
        $region49: #{tpu_custom_call.1} parent=47 // pred_check
          %p295 = pneg %p122
        $region50: #{tpu_custom_call.1} parent=47 // pred_check_branch
          %297 = sbr.rel (%p295) target = $region52
        $region51: #{tpu_custom_call.1} parent=47 // pred_region
          %298 = dma.done %s291, 512
        $region52: #{tpu_custom_call.1} parent=47 // pred_fallthru
          _
        %s299 = smul.u32 2, %s25
        %p300 = scmp.lt.s32.totalorder %s299, 1
        %s301 = scalar_select %p300, %s299, 1
        %s302 = smul.addr %s301, 8
        %s303 = scalar_lea.vmem %s0, %s302
        %p304 = pneg %p54
        %p305 = pneg %p51
        %p306 = pneg %p75
        %p307 = pneg %p72
        %p308 = pneg %p96
        %p309 = pneg %p93
        %s310 = sand.u32 %s109, 1
        %s311 = scalar_lea.sflag [#allocation4], %s310
        %s312 = sand.u32 %s109, 1
        %s313 = smul.addr %s312, 32
        %s314 = scalar_lea.vmem [#allocation3], %s313
        %p315 = pneg %p122
        %p316 = pneg %p119
        %p317 = scmp.lt.s32.totalorder %s26, 2
        %s318 = scalar_select %p317, %s26, 2
        %s319 = scalar_lea.vmem %s4, %s318
        %p320 = pneg %p148
        %p321 = pneg %p145
        %p322 = pneg %p169
        %p323 = pneg %p166
        %p324 = pneg %p190
        %p325 = pneg %p187
        %p326 = pneg %p216
        %p327 = pneg %p213
        %s328 = smul.u32 2, %s25
        %p329 = scmp.lt.s32.totalorder %s328, 1
        %s330 = scalar_select %p329, %s328, 1
        %s331 = smul.addr %s330, 8
        %s332 = scalar_lea.vmem %s7, %s331
        %s333 = smul.u32 2, %s25
        %p334 = scmp.lt.s32.totalorder %s333, 1
        %s335 = scalar_select %p334, %s333, 1
        %s336 = smul.addr %s335, 8
        %s337 = scalar_lea.vmem %s0, %s336
        %s338 = smul.u32 2, %s25
        %p339 = scmp.lt.s32.totalorder %s26, 2
        %s340 = scalar_select %p339, %s26, 2
        %s341 = scalar_lea.vmem %s4, %s340
        %s342 = smul.u32 2, %s25
        %p343 = scmp.lt.s32.totalorder %s342, 1
        %s344 = scalar_select %p343, %s342, 1
        %s345 = smul.addr %s344, 8
        %s346 = scalar_lea.vmem %s7, %s345
        %s347 = smul.u32 2, %s25
        %p348 = scmp.eq.s32.totalorder %s26, 0
        // Predicated region
        $region53: #{tpu_custom_call.1} parent=47 // pred_check
          %p349 = pneg %p348
        $region54: #{tpu_custom_call.1} parent=47 // pred_check_branch
          %351 = sbr.rel (%p349) target = $region56
        $region55: #{tpu_custom_call.1} parent=47 // pred_region
          %v352 = vld [vmem:[%s337] sm:$0xff]
          %v353 = vld [vmem:[%s337 + $0x8] sm:$0xff]
          %v354 = vld [vmem:[%s1] sm:$0xff]
          %v355 = vld [vmem:[%s1 + $0x8] sm:$0xff]
          %v356 = vld [vmem:[%s2] sm:$0x1]
          %v358 = vlaneseq
          %v359 = vshrl.u32 %v358, 7
          %v360 = vsub.s32 0, %v359
          %v361 = vrot.slane %v356, %v360
          %vm363 = vcmask 130048
          %v365 = vsel %vm363, %v352, 0
          %v368 = vsel %vm363, %v353, 0
          %370 = vmatprep.subr.mxu0 0.0
          %371 = vmatpush1.msra.mxu0 %v354
          %372 = vmatprep.subr.mxu0 0.0
          %373 = vmatpush1.msra.mxu0 %v355
          %374 = vmatprep.subr.mxu0 0.0
          %375 = vmatpush1.msra.mxu0 0.0
          %376 = vmatprep.subr.mxu0 0.0
          %377 = vmatpush1.msra.mxu0 0.0
          %378 = vmatprep.subr.mxu0 0.0
          %379 = vmatpush1.msra.mxu0 0.0
          %380 = vmatprep.subr.mxu0 0.0
          %381 = vmatpush1.msra.mxu0 0.0
          %382 = vmatprep.subr.mxu0 0.0
          %383 = vmatpush1.msra.mxu0 0.0
          %384 = vmatprep.subr.mxu0 0.0
          %385 = vmatpush1.msra.mxu0 0.0
          %386 = vmatprep.subr.mxu0 0.0
          %387 = vmatpush1.msra.mxu0 0.0
          %388 = vmatprep.subr.mxu0 0.0
          %389 = vmatpush1.msra.mxu0 0.0
          %390 = vmatprep.subr.mxu0 0.0
          %391 = vmatpush1.msra.mxu0 0.0
          %392 = vmatprep.subr.mxu0 0.0
          %393 = vmatpush1.msra.mxu0 0.0
          %394 = vmatprep.subr.mxu0 0.0
          %395 = vmatpush1.msra.mxu0 0.0
          %396 = vmatprep.subr.mxu0 0.0
          %397 = vmatpush1.msra.mxu0 0.0
          %398 = vmatprep.subr.mxu0 0.0
          %399 = vmatpush1.msra.mxu0 0.0
          %400 = vmatprep.subr.mxu0 0.0
          %401 = vmatpush1.msra.mxu0 0.0
          %402 = vmatprep.subr.mxu0 0.0
          %403 = vmatpush1.msra.mxu0 0.0
          %404 = vmatprep.subr.mxu0 0.0
          %405 = vmatpush1.msra.mxu0 0.0
          %406 = vmatprep.subr.mxu0 0.0
          %407 = vmatpush1.msra.mxu0 0.0
          %408 = vmatprep.subr.mxu0 0.0
          %409 = vmatpush1.msra.mxu0 0.0
          %410 = vmatprep.subr.mxu0 0.0
          %411 = vmatpush1.msra.mxu0 0.0
          %412 = vmatprep.subr.mxu0 0.0
          %413 = vmatpush1.msra.mxu0 0.0
          %414 = vmatprep.subr.mxu0 0.0
          %415 = vmatpush1.msra.mxu0 0.0
          %416 = vmatprep.subr.mxu0 0.0
          %417 = vmatpush1.msra.mxu0 0.0
          %418 = vmatprep.subr.mxu0 0.0
          %419 = vmatpush1.msra.mxu0 0.0
          %420 = vmatprep.subr.mxu0 0.0
          %421 = vmatpush1.msra.mxu0 0.0
          %422 = vmatprep.subr.mxu0 0.0
          %423 = vmatpush1.msra.mxu0 0.0
          %424 = vmatprep.subr.mxu0 0.0
          %425 = vmatpush1.msra.mxu0 0.0
          %426 = vmatprep.subr.mxu0 0.0
          %427 = vmatpush1.msra.mxu0 0.0
          %428 = vmatprep.subr.mxu0 0.0
          %429 = vmatpush1.msra.mxu0 0.0
          %430 = vmatprep.subr.mxu0 0.0
          %431 = vmatpush1.msra.mxu0 0.0
          %432 = vmatprep.subr.mxu0 0.0
          %433 = vmatpush1.msra.mxu0 0.0
          %434 = vmatprep.mubr.f32.mxu0 0.0
          %435 = vmatmul.mubr.f32.gmra.mrb[0].mxu0 %v365
          %v436 = vpop.f32.mrb[0].mxu0
          %v437 = vadd.f32 %v361, %v436
          %v438 = vpop.f32.mrb[0].mxu0
          %439 = vmatprep.mubr.f32.mxu0 0.0
          %440 = vmatmul.mubr.f32.gmra.mrb[0].mxu0 %v368
          %v441 = vpop.f32.mrb[0].mxu0
          %v442 = vadd.f32 %v361, %v441
          %v443 = vpop.f32.mrb[0].mxu0
          %444 = vdwg.mxu0
          %v445 = vand.u32 2147483647, %v437
          %v446 = vand.u32 2147483647, %v442
          %v447 = vmul.f32 %v445, 0.5
          %v448 = vmul.f32 %v446, 0.5
          %v449 = vmul.f32 %v445, 0.70710677
          %v450 = vmul.f32 %v446, 0.70710677
          %v451 = verf.f32.pop %v449
          %v452 = verf.f32.pop %v450
          %v453 = vadd.f32 %v451, 1.0
          %v454 = vadd.f32 %v452, 1.0
          %v455 = vmul.f32 %v447, %v453
          %v456 = vmul.f32 %v448, %v454
          %v459 = vand.u32 %v437, 2147483648
          %v460 = vand.u32 %v442, 2147483648
          %v463 = vor.u32 %v455, %v459
          %v464 = vor.u32 %v456, %v460
          %vm467 = vcmask 261120
          %468 = vst.msk [vmem:[#allocation2] sm:$0xff] %vm467, %v463
          %469 = vst.msk [vmem:[#allocation2 + $0x8] sm:$0xff] %vm467, %v464
        $region56: #{tpu_custom_call.1} parent=47 // pred_fallthru
          _
        %v470 = vld [vmem:[#allocation2] sm:$0xff]
        %v471 = vld [vmem:[#allocation2 + $0x8] sm:$0xff]
        %v472 = vld [vmem:[%s294] sm:$0xff]
        %v473 = vld [vmem:[%s294 + $0x8] sm:$0xff]
        %v474 = vld [vmem:[%s294 + $0x10] sm:$0xff]
        %v475 = vld [vmem:[%s294 + $0x18] sm:$0xff]
        %v476 = vld [vmem:[%s341] sm:$0x1]
        %v478 = vlaneseq
        %v479 = vshrl.u32 %v478, 7
        %v480 = vsub.s32 0, %v479
        %v481 = vrot.slane %v476, %v480
        %vm483 = vcmask 261120
        %v485 = vsel %vm483, %v470, 0
        %v488 = vsel %vm483, %v471, 0
        %490 = vmatprep.subr.mxu0 0.0
        %491 = vmatpush1.msra.mxu0 %v472
        %492 = vmatprep.subr.mxu0 0.0
        %493 = vmatpush1.msra.mxu0 %v473
        %494 = vmatprep.subr.mxu0 0.0
        %495 = vmatpush1.msra.mxu0 %v474
        %496 = vmatprep.subr.mxu0 0.0
        %497 = vmatpush1.msra.mxu0 %v475
        %498 = vmatprep.subr.mxu0 0.0
        %499 = vmatpush1.msra.mxu0 0.0
        %500 = vmatprep.subr.mxu0 0.0
        %501 = vmatpush1.msra.mxu0 0.0
        %502 = vmatprep.subr.mxu0 0.0
        %503 = vmatpush1.msra.mxu0 0.0
        %504 = vmatprep.subr.mxu0 0.0
        %505 = vmatpush1.msra.mxu0 0.0
        %506 = vmatprep.subr.mxu0 0.0
        %507 = vmatpush1.msra.mxu0 0.0
        %508 = vmatprep.subr.mxu0 0.0
        %509 = vmatpush1.msra.mxu0 0.0
        %510 = vmatprep.subr.mxu0 0.0
        %511 = vmatpush1.msra.mxu0 0.0
        %512 = vmatprep.subr.mxu0 0.0
        %513 = vmatpush1.msra.mxu0 0.0
        %514 = vmatprep.subr.mxu0 0.0
        %515 = vmatpush1.msra.mxu0 0.0
        %516 = vmatprep.subr.mxu0 0.0
        %517 = vmatpush1.msra.mxu0 0.0
        %518 = vmatprep.subr.mxu0 0.0
        %519 = vmatpush1.msra.mxu0 0.0
        %520 = vmatprep.subr.mxu0 0.0
        %521 = vmatpush1.msra.mxu0 0.0
        %522 = vmatprep.subr.mxu0 0.0
        %523 = vmatpush1.msra.mxu0 0.0
        %524 = vmatprep.subr.mxu0 0.0
        %525 = vmatpush1.msra.mxu0 0.0
        %526 = vmatprep.subr.mxu0 0.0
        %527 = vmatpush1.msra.mxu0 0.0
        %528 = vmatprep.subr.mxu0 0.0
        %529 = vmatpush1.msra.mxu0 0.0
        %530 = vmatprep.subr.mxu0 0.0
        %531 = vmatpush1.msra.mxu0 0.0
        %532 = vmatprep.subr.mxu0 0.0
        %533 = vmatpush1.msra.mxu0 0.0
        %534 = vmatprep.subr.mxu0 0.0
        %535 = vmatpush1.msra.mxu0 0.0
        %536 = vmatprep.subr.mxu0 0.0
        %537 = vmatpush1.msra.mxu0 0.0
        %538 = vmatprep.subr.mxu0 0.0
        %539 = vmatpush1.msra.mxu0 0.0
        %540 = vmatprep.subr.mxu0 0.0
        %541 = vmatpush1.msra.mxu0 0.0
        %542 = vmatprep.subr.mxu0 0.0
        %543 = vmatpush1.msra.mxu0 0.0
        %544 = vmatprep.subr.mxu0 0.0
        %545 = vmatpush1.msra.mxu0 0.0
        %546 = vmatprep.subr.mxu0 0.0
        %547 = vmatpush1.msra.mxu0 0.0
        %548 = vmatprep.subr.mxu0 0.0
        %549 = vmatpush1.msra.mxu0 0.0
        %550 = vmatprep.subr.mxu0 0.0
        %551 = vmatpush1.msra.mxu0 0.0
        %552 = vmatprep.subr.mxu0 0.0
        %553 = vmatpush1.msra.mxu0 0.0
        %554 = vmatprep.mubr.f32.mxu0 0.0
        %555 = vmatmul.mubr.f32.gmra.mrb[0].mxu0 %v485
        %v556 = vpop.f32.mrb[0].mxu0
        %v557 = vadd.f32 %v481, %v556
        %v558 = vpop.f32.mrb[0].mxu0
        %559 = vmatprep.mubr.f32.mxu0 0.0
        %560 = vmatmul.mubr.f32.gmra.mrb[0].mxu0 %v488
        %v561 = vpop.f32.mrb[0].mxu0
        %v562 = vadd.f32 %v481, %v561
        %v563 = vpop.f32.mrb[0].mxu0
        %564 = vdwg.mxu0
        %v565 = vand.u32 2147483647, %v557
        %v566 = vand.u32 2147483647, %v562
        %v567 = vmul.f32 %v565, 0.5
        %v568 = vmul.f32 %v566, 0.5
        %v569 = vmul.f32 %v565, 0.70710677
        %v570 = vmul.f32 %v566, 0.70710677
        %v571 = verf.f32.pop %v569
        %v572 = verf.f32.pop %v570
        %v573 = vadd.f32 %v571, 1.0
        %v574 = vadd.f32 %v572, 1.0
        %v575 = vmul.f32 %v567, %v573
        %v576 = vmul.f32 %v568, %v574
        %v579 = vand.u32 %v557, 2147483648
        %v580 = vand.u32 %v562, 2147483648
        %v583 = vor.u32 %v575, %v579
        %v584 = vor.u32 %v576, %v580
        %587 = vst.msk [vmem:[#allocation2] sm:$0xff] %vm483, %v583
        %588 = vst.msk [vmem:[#allocation2 + $0x8] sm:$0xff] %vm483, %v584
        %p589 = scmp.eq.s32.totalorder %s26, 2
        // Predicated region
        $region57: #{tpu_custom_call.1} parent=47 // pred_check
          %p590 = pneg %p589
        $region58: #{tpu_custom_call.1} parent=47 // pred_check_branch
          %592 = sbr.rel (%p590) target = $region60
        $region59: #{tpu_custom_call.1} parent=47 // pred_region
          %v593 = vld [vmem:[#allocation2] sm:$0xff]
          %v594 = vld [vmem:[#allocation2 + $0x8] sm:$0xff]
          %v595 = vld [vmem:[%s5] sm:$0xff]
          %v596 = vld [vmem:[%s5 + $0x8] sm:$0xff]
          %v597 = vld [vmem:[%s5 + $0x10] sm:$0xff]
          %v598 = vld [vmem:[%s5 + $0x18] sm:$0xff]
          %v599 = vld [vmem:[%s6] sm:$0x1]
          %v601 = vlaneseq
          %v602 = vshrl.u32 %v601, 7
          %v603 = vsub.s32 0, %v602
          %v604 = vrot.slane %v599, %v603
          %v607 = vsel %vm483, %v593, 0
          %v610 = vsel %vm483, %v594, 0
          %612 = vmatprep.subr.mxu0 0.0
          %613 = vmatpush1.msra.mxu0 %v595
          %614 = vmatprep.subr.mxu0 0.0
          %615 = vmatpush1.msra.mxu0 %v596
          %616 = vmatprep.subr.mxu0 0.0
          %617 = vmatpush1.msra.mxu0 %v597
          %618 = vmatprep.subr.mxu0 0.0
          %619 = vmatpush1.msra.mxu0 %v598
          %620 = vmatprep.subr.mxu0 0.0
          %621 = vmatpush1.msra.mxu0 0.0
          %622 = vmatprep.subr.mxu0 0.0
          %623 = vmatpush1.msra.mxu0 0.0
          %624 = vmatprep.subr.mxu0 0.0
          %625 = vmatpush1.msra.mxu0 0.0
          %626 = vmatprep.subr.mxu0 0.0
          %627 = vmatpush1.msra.mxu0 0.0
          %628 = vmatprep.subr.mxu0 0.0
          %629 = vmatpush1.msra.mxu0 0.0
          %630 = vmatprep.subr.mxu0 0.0
          %631 = vmatpush1.msra.mxu0 0.0
          %632 = vmatprep.subr.mxu0 0.0
          %633 = vmatpush1.msra.mxu0 0.0
          %634 = vmatprep.subr.mxu0 0.0
          %635 = vmatpush1.msra.mxu0 0.0
          %636 = vmatprep.subr.mxu0 0.0
          %637 = vmatpush1.msra.mxu0 0.0
          %638 = vmatprep.subr.mxu0 0.0
          %639 = vmatpush1.msra.mxu0 0.0
          %640 = vmatprep.subr.mxu0 0.0
          %641 = vmatpush1.msra.mxu0 0.0
          %642 = vmatprep.subr.mxu0 0.0
          %643 = vmatpush1.msra.mxu0 0.0
          %644 = vmatprep.subr.mxu0 0.0
          %645 = vmatpush1.msra.mxu0 0.0
          %646 = vmatprep.subr.mxu0 0.0
          %647 = vmatpush1.msra.mxu0 0.0
          %648 = vmatprep.subr.mxu0 0.0
          %649 = vmatpush1.msra.mxu0 0.0
          %650 = vmatprep.subr.mxu0 0.0
          %651 = vmatpush1.msra.mxu0 0.0
          %652 = vmatprep.subr.mxu0 0.0
          %653 = vmatpush1.msra.mxu0 0.0
          %654 = vmatprep.subr.mxu0 0.0
          %655 = vmatpush1.msra.mxu0 0.0
          %656 = vmatprep.subr.mxu0 0.0
          %657 = vmatpush1.msra.mxu0 0.0
          %658 = vmatprep.subr.mxu0 0.0
          %659 = vmatpush1.msra.mxu0 0.0
          %660 = vmatprep.subr.mxu0 0.0
          %661 = vmatpush1.msra.mxu0 0.0
          %662 = vmatprep.subr.mxu0 0.0
          %663 = vmatpush1.msra.mxu0 0.0
          %664 = vmatprep.subr.mxu0 0.0
          %665 = vmatpush1.msra.mxu0 0.0
          %666 = vmatprep.subr.mxu0 0.0
          %667 = vmatpush1.msra.mxu0 0.0
          %668 = vmatprep.subr.mxu0 0.0
          %669 = vmatpush1.msra.mxu0 0.0
          %670 = vmatprep.subr.mxu0 0.0
          %671 = vmatpush1.msra.mxu0 0.0
          %672 = vmatprep.subr.mxu0 0.0
          %673 = vmatpush1.msra.mxu0 0.0
          %674 = vmatprep.subr.mxu0 0.0
          %675 = vmatpush1.msra.mxu0 0.0
          %676 = vmatprep.mubr.f32.mxu0 0.0
          %677 = vmatmul.mubr.f32.gmra.mrb[0].mxu0 %v607
          %v678 = vpop.f32.mrb[0].mxu0
          %v679 = vadd.f32 %v604, %v678
          %v680 = vpop.f32.mrb[0].mxu0
          %681 = vmatprep.mubr.f32.mxu0 0.0
          %682 = vmatmul.mubr.f32.gmra.mrb[0].mxu0 %v610
          %v683 = vpop.f32.mrb[0].mxu0
          %v684 = vadd.f32 %v604, %v683
          %v685 = vpop.f32.mrb[0].mxu0
          %686 = vdwg.mxu0
          %vm687 = vcmask 64512
          %688 = vst.msk [vmem:[%s346] sm:$0xff] %vm687, %v679
          %689 = vst.msk [vmem:[%s346 + $0x8] sm:$0xff] %vm687, %v684
        $region60: #{tpu_custom_call.1} parent=47 // pred_fallthru
          _
        %s690 = smul.u32 2, %s25
        %p691 = scmp.lt.s32.totalorder %s690, 1
        %s692 = scalar_select %p691, %s690, 1
        %s693 = smul.addr %s692, 8
        %s694 = scalar_lea.vmem %s7, %s693
        // Predicated region
        $region61: #{tpu_custom_call.1} parent=47 // pred_check
          %p695 = pneg %p213
        $region62: #{tpu_custom_call.1} parent=47 // pred_check_branch
          %697 = sbr.rel (%p695) target = $region64
        $region63: #{tpu_custom_call.1} parent=47 // pred_region
          %s698 = smul.u32 2, %s25
        $region64: #{tpu_custom_call.1} parent=47 // pred_fallthru
          _
        // Predicated region
        $region65: #{tpu_custom_call.1} parent=47 // pred_check
          %p699 = pneg %p213
        $region66: #{tpu_custom_call.1} parent=47 // pred_check_branch
          %701 = sbr.rel (%p699) target = $region68
        $region67: #{tpu_custom_call.1} parent=47 // pred_region
          %s702 = smul.u32 2, %s25
          %p703 = scmp.lt.s32.totalorder %s702, 1
          %s704 = scalar_select %p703, %s702, 1
          %s705 = smul.addr %s704, 8
          %s706 = scalar_lea.vmem %s7, %s705
        $region68: #{tpu_custom_call.1} parent=47 // pred_fallthru
          _
      $region48: #{tpu_custom_call.1} parent=5 // pred_fallthru
        _
      %p707 = scmp.le.s32.totalorder 2, %s16
      // Predicated region
      $region69: #{tpu_custom_call.1} parent=5 // pred_check
        %p708 = pneg %p707
      $region70: #{tpu_custom_call.1} parent=5 // pred_check_branch
        %710 = sbr.rel (%p708) target = $region72
      $region71: #{tpu_custom_call.1} parent=5 // pred_region
        %s711 = ssub.s32 %s16, 2
      $region72: #{tpu_custom_call.1} parent=5 // pred_fallthru
        _
    $region6: #{tpu_custom_call.1} parent=1 // loop_footer
      %s20 = sadd.s32 1, %s16
    $region7: #{tpu_custom_call.1} parent=1 // loop_footer_branch
      %15 = sbr.rel target = $region3
    $region8: #{tpu_custom_call.1} parent=1 // loop_exit
      _
    %712 = vsyncpa [#allocation4], 1
    %s713 = scalar_lea.sflag [#allocation4], 1
    %714 = vsyncpa %s713, 1

// kernel: tpu_custom_call.1
$region0: #{tpu_custom_call.1}
  #allocation0 [shape = 'u32[]', space=smem, size = 0x4, offset = 0x4, fixed_abs, tag = 'smem constant byte address 0x4 - core index']
  #allocation1 [shape = 'u32[144,128]{1,0:T(1,128)}', space=vmem, size = 0x12000, scoped, tag = 'internal scratch']
  #allocation2 [shape = 'f32[16,32]{1,0:T(8,128)}', space=vmem, size = 0x2000, scoped, tag = 'scratch operand']
  %s0 = inlined_call_operand.vmem [shape: f32[16,16], index: 0, kind: input, shape index: {}]
  %s1 = inlined_call_operand.vmem [shape: f32[16,32], index: 1, kind: input, shape index: {}]
  %s2 = inlined_call_operand.vmem [shape: f32[1,32], index: 2, kind: input, shape index: {}]
  %s3 = inlined_call_operand.hbm [shape: f32[3,32,32], index: 3, kind: input, shape index: {}]
  %s4 = inlined_call_operand.vmem [shape: f32[3,1,32], index: 4, kind: input, shape index: {}]
  %s5 = inlined_call_operand.vmem [shape: f32[32,8], index: 5, kind: input, shape index: {}]
  %s6 = inlined_call_operand.vmem [shape: f32[1,8], index: 6, kind: input, shape index: {}]
  %s7 = inlined_call_operand.vmem [shape: f32[16,8], index: 7, kind: output, shape index: {}]
  %s8 = sld [smem:[#allocation0]]
  $region73: #{tpu_custom_call.1} parent=0
    _
  %s10 = ssub.s32 1, %s8
  %s11 = scalar_select 0, %s10, %s8
  $region1: #{tpu_custom_call.1} parent=0
    #allocation3 [shape = 'u8[32768]{0}', space=vmem, size = 0x8000, scoped, tag = 'input window, operand 3']
    #allocation4 [shape = 's32[2]{0}', space=sflag, size = 0x8, scoped, tag = 'scoped memory for tpu_custom_call.1']
    %12 = vsyncpa [#allocation4], 0
    %s13 = scalar_lea.sflag [#allocation4], 1
    %14 = vsyncpa %s13, 0
    loop: start=0, step=1, limit=5
    $region2: #{tpu_custom_call.1} parent=1 // loop_pre_header
      _
    $region3: #{tpu_custom_call.1} parent=1 // loop_header
      %s16 = sphi 0, %s20
      %p17 = scmp.ge.s32.totalorder %s16, 5
      %s23 = sphi 0, %s35
      %s24 = sphi 0, %s31
      %s25 = sphi 0, %s23
      %s26 = sphi 0, %s24
      %s27 = sphi 0, %s25
      %s28 = sphi 0, %s26
      %s38 = sphi 0, %s40
      %s41 = sphi 0, %s38
      %s42 = sphi 0, %s41
      %s58 = sphi 0, %s42
      %s62 = sphi 0, %s62
      %s64 = sphi 0, %s62
      %s65 = sphi 0, %s64
      %s79 = sphi 0, %s65
      %s83 = sphi 0, %s83
      %s85 = sphi 0, %s83
      %s86 = sphi 0, %s85
      %s100 = sphi 0, %s86
      %s106 = sphi 0, %s108
      %s109 = sphi 0, %s106
      %s110 = sphi 0, %s109
      %s126 = sphi 0, %s110
      %s132 = sphi 0, %s134
      %s135 = sphi 0, %s132
      %s136 = sphi 0, %s135
      %s152 = sphi 0, %s136
      %s156 = sphi 0, %s156
      %s158 = sphi 0, %s156
      %s159 = sphi 0, %s158
      %s173 = sphi 0, %s159
      %s177 = sphi 0, %s177
      %s179 = sphi 0, %s177
      %s180 = sphi 0, %s179
      %s194 = sphi 0, %s180
      %s200 = sphi 0, %s202
      %s203 = sphi 0, %s200
      %s204 = sphi 0, %s203
      %s220 = sphi 0, %s204
    $region4: #{tpu_custom_call.1} parent=1 // loop_header_branch
      %19 = sbr.rel (%p17) target = $region8
    $region5: #{tpu_custom_call.1} parent=1 // loop_body
      %s21 = ssub.s32 %s16, 1
      %s22 = ssub.s32 %s16, 2
      %s29 = sadd.s32 1, %s24
      %p30 = scmp.ge.s32.totalorder %s29, 3
      %s31 = scalar_select %p30, 0, %s29
      %s32 = sadd.s32 1, %s23
      %s33 = scalar_select %p30, %s32, %s23
      %p34 = scmp.ge.s32.totalorder %s33, 1
      %s35 = scalar_select %p34, 0, %s33
      %s36 = ssub.s32 %s23, %s35
      %p37 = scmp.eq.s32.totalorder %s36, 0
      %s39 = sadd.s32 %s38, 1
      %s40 = scalar_select %p37, %s38, %s39
      %p43 = pneg %p37
      %p44 = scmp.eq.s32.totalorder %s16, 2
      %p45 = por %p43, %p44
      %p46 = scmp.ne.s32.totalorder %s38, %s41
      %p47 = scmp.eq.s32.totalorder %s16, 0
      %p48 = por %p46, %p47
      %p49 = scmp.ne.s32.totalorder %s38, %s41
      %p50 = scmp.eq.s32.totalorder %s21, 2
      %p51 = por %p49, %p50
      %p52 = scmp.ne.s32.totalorder %s41, %s42
      %p53 = scmp.eq.s32.totalorder %s21, 0
      %p54 = por %p52, %p53
      %p55 = scmp.ne.s32.totalorder %s41, %s42
      %p56 = scmp.eq.s32.totalorder %s22, 2
      %p57 = por %p55, %p56
      %p59 = scmp.ne.s32.totalorder %s42, %s58
      %p60 = scmp.eq.s32.totalorder %s22, 0
      %p61 = por %p59, %p60
      %s63 = sadd.s32 %s62, 1
      %p66 = scmp.eq.s32.totalorder %s16, 2
      %p67 = scmp.ne.s32.totalorder %s62, %s64
      %p68 = scmp.eq.s32.totalorder %s16, 0
      %p69 = por %p67, %p68
      %p70 = scmp.ne.s32.totalorder %s62, %s64
      %p71 = scmp.eq.s32.totalorder %s21, 2
      %p72 = por %p70, %p71
      %p73 = scmp.ne.s32.totalorder %s64, %s65
      %p74 = scmp.eq.s32.totalorder %s21, 0
      %p75 = por %p73, %p74
      %p76 = scmp.ne.s32.totalorder %s64, %s65
      %p77 = scmp.eq.s32.totalorder %s22, 2
      %p78 = por %p76, %p77
      %p80 = scmp.ne.s32.totalorder %s65, %s79
      %p81 = scmp.eq.s32.totalorder %s22, 0
      %p82 = por %p80, %p81
      %s84 = sadd.s32 %s83, 1
      %p87 = scmp.eq.s32.totalorder %s16, 2
      %p88 = scmp.ne.s32.totalorder %s83, %s85
      %p89 = scmp.eq.s32.totalorder %s16, 0
      %p90 = por %p88, %p89
      %p91 = scmp.ne.s32.totalorder %s83, %s85
      %p92 = scmp.eq.s32.totalorder %s21, 2
      %p93 = por %p91, %p92
      %p94 = scmp.ne.s32.totalorder %s85, %s86
      %p95 = scmp.eq.s32.totalorder %s21, 0
      %p96 = por %p94, %p95
      %p97 = scmp.ne.s32.totalorder %s85, %s86
      %p98 = scmp.eq.s32.totalorder %s22, 2
      %p99 = por %p97, %p98
      %p101 = scmp.ne.s32.totalorder %s86, %s100
      %p102 = scmp.eq.s32.totalorder %s22, 0
      %p103 = por %p101, %p102
      %s104 = ssub.s32 %s24, %s31
      %p105 = scmp.eq.s32.totalorder %s104, 0
      %s107 = sadd.s32 %s106, 1
      %s108 = scalar_select %p105, %s106, %s107
      %p111 = pneg %p105
      %p112 = scmp.eq.s32.totalorder %s16, 2
      %p113 = por %p111, %p112
      %p114 = scmp.ne.s32.totalorder %s106, %s109
      %p115 = scmp.eq.s32.totalorder %s16, 0
      %p116 = por %p114, %p115
      %p117 = scmp.ne.s32.totalorder %s106, %s109
      %p118 = scmp.eq.s32.totalorder %s21, 2
      %p119 = por %p117, %p118
      %p120 = scmp.ne.s32.totalorder %s109, %s110
      %p121 = scmp.eq.s32.totalorder %s21, 0
      %p122 = por %p120, %p121
      %p123 = scmp.ne.s32.totalorder %s109, %s110
      %p124 = scmp.eq.s32.totalorder %s22, 2
      %p125 = por %p123, %p124
      %p127 = scmp.ne.s32.totalorder %s110, %s126
      %p128 = scmp.eq.s32.totalorder %s22, 0
      %p129 = por %p127, %p128
      %s130 = ssub.s32 %s24, %s31
      %p131 = scmp.eq.s32.totalorder %s130, 0
      %s133 = sadd.s32 %s132, 1
      %s134 = scalar_select %p131, %s132, %s133
      %p137 = pneg %p131
      %p138 = scmp.eq.s32.totalorder %s16, 2
      %p139 = por %p137, %p138
      %p140 = scmp.ne.s32.totalorder %s132, %s135
      %p141 = scmp.eq.s32.totalorder %s16, 0
      %p142 = por %p140, %p141
      %p143 = scmp.ne.s32.totalorder %s132, %s135
      %p144 = scmp.eq.s32.totalorder %s21, 2
      %p145 = por %p143, %p144
      %p146 = scmp.ne.s32.totalorder %s135, %s136
      %p147 = scmp.eq.s32.totalorder %s21, 0
      %p148 = por %p146, %p147
      %p149 = scmp.ne.s32.totalorder %s135, %s136
      %p150 = scmp.eq.s32.totalorder %s22, 2
      %p151 = por %p149, %p150
      %p153 = scmp.ne.s32.totalorder %s136, %s152
      %p154 = scmp.eq.s32.totalorder %s22, 0
      %p155 = por %p153, %p154
      %s157 = sadd.s32 %s156, 1
      %p160 = scmp.eq.s32.totalorder %s16, 2
      %p161 = scmp.ne.s32.totalorder %s156, %s158
      %p162 = scmp.eq.s32.totalorder %s16, 0
      %p163 = por %p161, %p162
      %p164 = scmp.ne.s32.totalorder %s156, %s158
      %p165 = scmp.eq.s32.totalorder %s21, 2
      %p166 = por %p164, %p165
      %p167 = scmp.ne.s32.totalorder %s158, %s159
      %p168 = scmp.eq.s32.totalorder %s21, 0
      %p169 = por %p167, %p168
      %p170 = scmp.ne.s32.totalorder %s158, %s159
      %p171 = scmp.eq.s32.totalorder %s22, 2
      %p172 = por %p170, %p171
      %p174 = scmp.ne.s32.totalorder %s159, %s173
      %p175 = scmp.eq.s32.totalorder %s22, 0
      %p176 = por %p174, %p175
      %s178 = sadd.s32 %s177, 1
      %p181 = scmp.eq.s32.totalorder %s16, 2
      %p182 = scmp.ne.s32.totalorder %s177, %s179
      %p183 = scmp.eq.s32.totalorder %s16, 0
      %p184 = por %p182, %p183
      %p185 = scmp.ne.s32.totalorder %s177, %s179
      %p186 = scmp.eq.s32.totalorder %s21, 2
      %p187 = por %p185, %p186
      %p188 = scmp.ne.s32.totalorder %s179, %s180
      %p189 = scmp.eq.s32.totalorder %s21, 0
      %p190 = por %p188, %p189
      %p191 = scmp.ne.s32.totalorder %s179, %s180
      %p192 = scmp.eq.s32.totalorder %s22, 2
      %p193 = por %p191, %p192
      %p195 = scmp.ne.s32.totalorder %s180, %s194
      %p196 = scmp.eq.s32.totalorder %s22, 0
      %p197 = por %p195, %p196
      %s198 = ssub.s32 %s23, %s35
      %p199 = scmp.eq.s32.totalorder %s198, 0
      %s201 = sadd.s32 %s200, 1
      %s202 = scalar_select %p199, %s200, %s201
      %p205 = pneg %p199
      %p206 = scmp.eq.s32.totalorder %s16, 2
      %p207 = por %p205, %p206
      %p208 = scmp.ne.s32.totalorder %s200, %s203
      %p209 = scmp.eq.s32.totalorder %s16, 0
      %p210 = por %p208, %p209
      %p211 = scmp.ne.s32.totalorder %s200, %s203
      %p212 = scmp.eq.s32.totalorder %s21, 2
      %p213 = por %p211, %p212
      %p214 = scmp.ne.s32.totalorder %s203, %s204
      %p215 = scmp.eq.s32.totalorder %s21, 0
      %p216 = por %p214, %p215
      %p217 = scmp.ne.s32.totalorder %s203, %s204
      %p218 = scmp.eq.s32.totalorder %s22, 2
      %p219 = por %p217, %p218
      %p221 = scmp.ne.s32.totalorder %s204, %s220
      %p222 = scmp.eq.s32.totalorder %s22, 0
      %p223 = por %p221, %p222
      %p224 = scmp.le.s32.totalorder 1, %s16
      %p225 = scmp.lt.s32.totalorder %s16, 4
      %p226 = pnand %p224, %p225
      %p227 = pneg %p226
      // Predicated region
      $region9: #{tpu_custom_call.1} parent=5 // pred_check
        _
      $region10: #{tpu_custom_call.1} parent=5 // pred_check_branch
        %229 = sbr.rel (%p226) target = $region12
      $region11: #{tpu_custom_call.1} parent=5 // pred_region
        %s230 = ssub.s32 %s16, 1
        // Predicated region
        $region13: #{tpu_custom_call.1} parent=11 // pred_check
          %p231 = pneg %p54
        $region14: #{tpu_custom_call.1} parent=11 // pred_check_branch
          %233 = sbr.rel (%p231) target = $region16
        $region15: #{tpu_custom_call.1} parent=11 // pred_region
          %s234 = smul.u32 2, %s25
          %p235 = scmp.lt.s32.totalorder %s234, 1
          %s236 = scalar_select %p235, %s234, 1
          %s237 = smul.addr %s236, 8
          %s238 = scalar_lea.vmem %s0, %s237
          %s239 = smul.u32 2, %s25
        $region16: #{tpu_custom_call.1} parent=11 // pred_fallthru
          _
        // Predicated region
        $region17: #{tpu_custom_call.1} parent=11 // pred_check
          %p240 = pneg %p75
        $region18: #{tpu_custom_call.1} parent=11 // pred_check_branch
          %242 = sbr.rel (%p240) target = $region20
        $region19: #{tpu_custom_call.1} parent=11 // pred_region
          _
        $region20: #{tpu_custom_call.1} parent=11 // pred_fallthru
          _
        // Predicated region
        $region21: #{tpu_custom_call.1} parent=11 // pred_check
          %p243 = pneg %p96
        $region22: #{tpu_custom_call.1} parent=11 // pred_check_branch
          %245 = sbr.rel (%p243) target = $region24
        $region23: #{tpu_custom_call.1} parent=11 // pred_region
          _
        $region24: #{tpu_custom_call.1} parent=11 // pred_fallthru
          _
        // Predicated region
        $region25: #{tpu_custom_call.1} parent=11 // pred_check
          %p246 = pneg %p169
        $region26: #{tpu_custom_call.1} parent=11 // pred_check_branch
          %248 = sbr.rel (%p246) target = $region28
        $region27: #{tpu_custom_call.1} parent=11 // pred_region
          _
        $region28: #{tpu_custom_call.1} parent=11 // pred_fallthru
          _
        // Predicated region
        $region29: #{tpu_custom_call.1} parent=11 // pred_check
          %p249 = pneg %p190
        $region30: #{tpu_custom_call.1} parent=11 // pred_check_branch
          %251 = sbr.rel (%p249) target = $region32
        $region31: #{tpu_custom_call.1} parent=11 // pred_region
          _
        $region32: #{tpu_custom_call.1} parent=11 // pred_fallthru
          _
      $region12: #{tpu_custom_call.1} parent=5 // pred_fallthru
        _
      %p252 = scmp.lt.s32.totalorder %s16, 3
      // Predicated region
      $region33: #{tpu_custom_call.1} parent=5 // pred_check
        %p253 = pneg %p252
      $region34: #{tpu_custom_call.1} parent=5 // pred_check_branch
        %255 = sbr.rel (%p253) target = $region36
      $region35: #{tpu_custom_call.1} parent=5 // pred_region
        // Predicated region
        $region37: #{tpu_custom_call.1} parent=35 // pred_check
          %p256 = pneg %p116
        $region38: #{tpu_custom_call.1} parent=35 // pred_check_branch
          %258 = sbr.rel (%p256) target = $region40
        $region39: #{tpu_custom_call.1} parent=35 // pred_region
          %s259 = sand.u32 %s106, 1
          %s260 = scalar_lea.sflag [#allocation4], %s259
          %s261 = sand.u32 %s106, 1
          %s262 = smul.addr %s261, 32
          %s263 = scalar_lea.vmem [#allocation3], %s262
          %s265 = ssub.s32 512, 512
          %266 = vsyncadd %s260, %s265
          %s267 = smul.addr %s24, 4
          %s268 = smul.addr %s267, 128
          %s269 = scalar_lea.hbm %s3, %s268
          %s270 = sshll.u32 %s263, 4
          %s271 = int_to_ptr.vmem [resolvable:$true] %s270
          %276 = dma.hbm_to_vmem [thread:$0]  %s269, 512, %s271, %s260, 128, 128, 8
        $region40: #{tpu_custom_call.1} parent=35 // pred_fallthru
          _
        // Predicated region
        $region41: #{tpu_custom_call.1} parent=35 // pred_check
          %p277 = pneg %p142
        $region42: #{tpu_custom_call.1} parent=35 // pred_check_branch
          %279 = sbr.rel (%p277) target = $region44
        $region43: #{tpu_custom_call.1} parent=35 // pred_region
          %p280 = scmp.lt.s32.totalorder %s24, 2
          %s281 = scalar_select %p280, %s24, 2
          %s282 = scalar_lea.vmem %s4, %s281
        $region44: #{tpu_custom_call.1} parent=35 // pred_fallthru
          _
      $region36: #{tpu_custom_call.1} parent=5 // pred_fallthru
        _
      %p283 = scmp.le.s32.totalorder 1, %s16
      %p284 = scmp.lt.s32.totalorder %s16, 4
      %p285 = pnand %p283, %p284
      %p286 = pneg %p285
      // Predicated region
      $region45: #{tpu_custom_call.1} parent=5 // pred_check
        _
      $region46: #{tpu_custom_call.1} parent=5 // pred_check_branch
        %288 = sbr.rel (%p285) target = $region48
      $region47: #{tpu_custom_call.1} parent=5 // pred_region
        %s289 = ssub.s32 %s16, 1
        %s290 = sand.u32 %s109, 1
        %s291 = scalar_lea.sflag [#allocation4], %s290
        %s292 = sand.u32 %s109, 1
        %s293 = smul.addr %s292, 32
        %s294 = scalar_lea.vmem [#allocation3], %s293
        // Predicated region
        $region49: #{tpu_custom_call.1} parent=47 // pred_check
          %p295 = pneg %p122
        $region50: #{tpu_custom_call.1} parent=47 // pred_check_branch
          %297 = sbr.rel (%p295) target = $region52
        $region51: #{tpu_custom_call.1} parent=47 // pred_region
          %298 = dma.done %s291, 512
        $region52: #{tpu_custom_call.1} parent=47 // pred_fallthru
          _
        %s299 = smul.u32 2, %s25
        %p300 = scmp.lt.s32.totalorder %s299, 1
        %s301 = scalar_select %p300, %s299, 1
        %s302 = smul.addr %s301, 8
        %s303 = scalar_lea.vmem %s0, %s302
        %p304 = pneg %p54
        %p305 = pneg %p51
        %p306 = pneg %p75
        %p307 = pneg %p72
        %p308 = pneg %p96
        %p309 = pneg %p93
        %s310 = sand.u32 %s109, 1
        %s311 = scalar_lea.sflag [#allocation4], %s310
        %s312 = sand.u32 %s109, 1
        %s313 = smul.addr %s312, 32
        %s314 = scalar_lea.vmem [#allocation3], %s313
        %p315 = pneg %p122
        %p316 = pneg %p119
        %p317 = scmp.lt.s32.totalorder %s26, 2
        %s318 = scalar_select %p317, %s26, 2
        %s319 = scalar_lea.vmem %s4, %s318
        %p320 = pneg %p148
        %p321 = pneg %p145
        %p322 = pneg %p169
        %p323 = pneg %p166
        %p324 = pneg %p190
        %p325 = pneg %p187
        %p326 = pneg %p216
        %p327 = pneg %p213
        %s328 = smul.u32 2, %s25
        %p329 = scmp.lt.s32.totalorder %s328, 1
        %s330 = scalar_select %p329, %s328, 1
        %s331 = smul.addr %s330, 8
        %s332 = scalar_lea.vmem %s7, %s331
        %s333 = smul.u32 2, %s25
        %p334 = scmp.lt.s32.totalorder %s333, 1
        %s335 = scalar_select %p334, %s333, 1
        %s336 = smul.addr %s335, 8
        %s337 = scalar_lea.vmem %s0, %s336
        %s338 = smul.u32 2, %s25
        %p339 = scmp.lt.s32.totalorder %s26, 2
        %s340 = scalar_select %p339, %s26, 2
        %s341 = scalar_lea.vmem %s4, %s340
        %s342 = smul.u32 2, %s25
        %p343 = scmp.lt.s32.totalorder %s342, 1
        %s344 = scalar_select %p343, %s342, 1
        %s345 = smul.addr %s344, 8
        %s346 = scalar_lea.vmem %s7, %s345
        %s347 = smul.u32 2, %s25
        %p348 = scmp.eq.s32.totalorder %s26, 0
        // Predicated region
        $region53: #{tpu_custom_call.1} parent=47 // pred_check
          %p349 = pneg %p348
        $region54: #{tpu_custom_call.1} parent=47 // pred_check_branch
          %351 = sbr.rel (%p349) target = $region56
        $region55: #{tpu_custom_call.1} parent=47 // pred_region
          %v352 = vld [vmem:[%s337] sm:$0xff]
          %v353 = vld [vmem:[%s337 + $0x8] sm:$0xff]
          %v354 = vld [vmem:[%s1] sm:$0xff]
          %v355 = vld [vmem:[%s1 + $0x8] sm:$0xff]
          %v356 = vld [vmem:[%s2] sm:$0x1]
          %v358 = vlaneseq
          %v359 = vshrl.u32 %v358, 7
          %v360 = vsub.s32 0, %v359
          %v361 = vrot.slane %v356, %v360
          %vm363 = vcmask 130048
          %v365 = vsel %vm363, %v352, 0
          %v368 = vsel %vm363, %v353, 0
          %370 = vmatprep.subr.mxu0 0.0
          %371 = vmatpush1.msra.mxu0 %v354
          %372 = vmatprep.subr.mxu0 0.0
          %373 = vmatpush1.msra.mxu0 %v355
          %374 = vmatprep.subr.mxu0 0.0
          %375 = vmatpush1.msra.mxu0 0.0
          %376 = vmatprep.subr.mxu0 0.0
          %377 = vmatpush1.msra.mxu0 0.0
          %378 = vmatprep.subr.mxu0 0.0
          %379 = vmatpush1.msra.mxu0 0.0
          %380 = vmatprep.subr.mxu0 0.0
          %381 = vmatpush1.msra.mxu0 0.0
          %382 = vmatprep.subr.mxu0 0.0
          %383 = vmatpush1.msra.mxu0 0.0
          %384 = vmatprep.subr.mxu0 0.0
          %385 = vmatpush1.msra.mxu0 0.0
          %386 = vmatprep.subr.mxu0 0.0
          %387 = vmatpush1.msra.mxu0 0.0
          %388 = vmatprep.subr.mxu0 0.0
          %389 = vmatpush1.msra.mxu0 0.0
          %390 = vmatprep.subr.mxu0 0.0
          %391 = vmatpush1.msra.mxu0 0.0
          %392 = vmatprep.subr.mxu0 0.0
          %393 = vmatpush1.msra.mxu0 0.0
          %394 = vmatprep.subr.mxu0 0.0
          %395 = vmatpush1.msra.mxu0 0.0
          %396 = vmatprep.subr.mxu0 0.0
          %397 = vmatpush1.msra.mxu0 0.0
          %398 = vmatprep.subr.mxu0 0.0
          %399 = vmatpush1.msra.mxu0 0.0
          %400 = vmatprep.subr.mxu0 0.0
          %401 = vmatpush1.msra.mxu0 0.0
          %402 = vmatprep.subr.mxu0 0.0
          %403 = vmatpush1.msra.mxu0 0.0
          %404 = vmatprep.subr.mxu0 0.0
          %405 = vmatpush1.msra.mxu0 0.0
          %406 = vmatprep.subr.mxu0 0.0
          %407 = vmatpush1.msra.mxu0 0.0
          %408 = vmatprep.subr.mxu0 0.0
          %409 = vmatpush1.msra.mxu0 0.0
          %410 = vmatprep.subr.mxu0 0.0
          %411 = vmatpush1.msra.mxu0 0.0
          %412 = vmatprep.subr.mxu0 0.0
          %413 = vmatpush1.msra.mxu0 0.0
          %414 = vmatprep.subr.mxu0 0.0
          %415 = vmatpush1.msra.mxu0 0.0
          %416 = vmatprep.subr.mxu0 0.0
          %417 = vmatpush1.msra.mxu0 0.0
          %418 = vmatprep.subr.mxu0 0.0
          %419 = vmatpush1.msra.mxu0 0.0
          %420 = vmatprep.subr.mxu0 0.0
          %421 = vmatpush1.msra.mxu0 0.0
          %422 = vmatprep.subr.mxu0 0.0
          %423 = vmatpush1.msra.mxu0 0.0
          %424 = vmatprep.subr.mxu0 0.0
          %425 = vmatpush1.msra.mxu0 0.0
          %426 = vmatprep.subr.mxu0 0.0
          %427 = vmatpush1.msra.mxu0 0.0
          %428 = vmatprep.subr.mxu0 0.0
          %429 = vmatpush1.msra.mxu0 0.0
          %430 = vmatprep.subr.mxu0 0.0
          %431 = vmatpush1.msra.mxu0 0.0
          %432 = vmatprep.subr.mxu0 0.0
          %433 = vmatpush1.msra.mxu0 0.0
          %434 = vmatprep.mubr.f32.mxu0 0.0
          %435 = vmatmul.mubr.f32.gmra.mrb[0].mxu0 %v365
          %v436 = vpop.f32.mrb[0].mxu0
          %v437 = vadd.f32 %v361, %v436
          %v438 = vpop.f32.mrb[0].mxu0
          %439 = vmatprep.mubr.f32.mxu0 0.0
          %440 = vmatmul.mubr.f32.gmra.mrb[0].mxu0 %v368
          %v441 = vpop.f32.mrb[0].mxu0
          %v442 = vadd.f32 %v361, %v441
          %v443 = vpop.f32.mrb[0].mxu0
          %444 = vdwg.mxu0
          %v445 = vand.u32 2147483647, %v437
          %v446 = vand.u32 2147483647, %v442
          %v447 = vmul.f32 %v445, 0.5
          %v448 = vmul.f32 %v446, 0.5
          %v449 = vmul.f32 %v445, 0.70710677
          %v450 = vmul.f32 %v446, 0.70710677
          %v451 = verf.f32.pop %v449
          %v452 = verf.f32.pop %v450
          %v453 = vadd.f32 %v451, 1.0
          %v454 = vadd.f32 %v452, 1.0
          %v455 = vmul.f32 %v447, %v453
          %v456 = vmul.f32 %v448, %v454
          %v459 = vand.u32 %v437, 2147483648
          %v460 = vand.u32 %v442, 2147483648
          %v463 = vor.u32 %v455, %v459
          %v464 = vor.u32 %v456, %v460
          %vm467 = vcmask 261120
          %468 = vst.msk [vmem:[#allocation2] sm:$0xff] %vm467, %v463
          %469 = vst.msk [vmem:[#allocation2 + $0x8] sm:$0xff] %vm467, %v464
        $region56: #{tpu_custom_call.1} parent=47 // pred_fallthru
          _
        %v470 = vld [vmem:[#allocation2] sm:$0xff]
        %v471 = vld [vmem:[#allocation2 + $0x8] sm:$0xff]
        %v472 = vld [vmem:[%s294] sm:$0xff]
        %v473 = vld [vmem:[%s294 + $0x8] sm:$0xff]
        %v474 = vld [vmem:[%s294 + $0x10] sm:$0xff]
        %v475 = vld [vmem:[%s294 + $0x18] sm:$0xff]
        %v476 = vld [vmem:[%s341] sm:$0x1]
        %v478 = vlaneseq
        %v479 = vshrl.u32 %v478, 7
        %v480 = vsub.s32 0, %v479
        %v481 = vrot.slane %v476, %v480
        %vm483 = vcmask 261120
        %v485 = vsel %vm483, %v470, 0
        %v488 = vsel %vm483, %v471, 0
        %490 = vmatprep.subr.mxu0 0.0
        %491 = vmatpush1.msra.mxu0 %v472
        %492 = vmatprep.subr.mxu0 0.0
        %493 = vmatpush1.msra.mxu0 %v473
        %494 = vmatprep.subr.mxu0 0.0
        %495 = vmatpush1.msra.mxu0 %v474
        %496 = vmatprep.subr.mxu0 0.0
        %497 = vmatpush1.msra.mxu0 %v475
        %498 = vmatprep.subr.mxu0 0.0
        %499 = vmatpush1.msra.mxu0 0.0
        %500 = vmatprep.subr.mxu0 0.0
        %501 = vmatpush1.msra.mxu0 0.0
        %502 = vmatprep.subr.mxu0 0.0
        %503 = vmatpush1.msra.mxu0 0.0
        %504 = vmatprep.subr.mxu0 0.0
        %505 = vmatpush1.msra.mxu0 0.0
        %506 = vmatprep.subr.mxu0 0.0
        %507 = vmatpush1.msra.mxu0 0.0
        %508 = vmatprep.subr.mxu0 0.0
        %509 = vmatpush1.msra.mxu0 0.0
        %510 = vmatprep.subr.mxu0 0.0
        %511 = vmatpush1.msra.mxu0 0.0
        %512 = vmatprep.subr.mxu0 0.0
        %513 = vmatpush1.msra.mxu0 0.0
        %514 = vmatprep.subr.mxu0 0.0
        %515 = vmatpush1.msra.mxu0 0.0
        %516 = vmatprep.subr.mxu0 0.0
        %517 = vmatpush1.msra.mxu0 0.0
        %518 = vmatprep.subr.mxu0 0.0
        %519 = vmatpush1.msra.mxu0 0.0
        %520 = vmatprep.subr.mxu0 0.0
        %521 = vmatpush1.msra.mxu0 0.0
        %522 = vmatprep.subr.mxu0 0.0
        %523 = vmatpush1.msra.mxu0 0.0
        %524 = vmatprep.subr.mxu0 0.0
        %525 = vmatpush1.msra.mxu0 0.0
        %526 = vmatprep.subr.mxu0 0.0
        %527 = vmatpush1.msra.mxu0 0.0
        %528 = vmatprep.subr.mxu0 0.0
        %529 = vmatpush1.msra.mxu0 0.0
        %530 = vmatprep.subr.mxu0 0.0
        %531 = vmatpush1.msra.mxu0 0.0
        %532 = vmatprep.subr.mxu0 0.0
        %533 = vmatpush1.msra.mxu0 0.0
        %534 = vmatprep.subr.mxu0 0.0
        %535 = vmatpush1.msra.mxu0 0.0
        %536 = vmatprep.subr.mxu0 0.0
        %537 = vmatpush1.msra.mxu0 0.0
        %538 = vmatprep.subr.mxu0 0.0
        %539 = vmatpush1.msra.mxu0 0.0
        %540 = vmatprep.subr.mxu0 0.0
        %541 = vmatpush1.msra.mxu0 0.0
        %542 = vmatprep.subr.mxu0 0.0
        %543 = vmatpush1.msra.mxu0 0.0
        %544 = vmatprep.subr.mxu0 0.0
        %545 = vmatpush1.msra.mxu0 0.0
        %546 = vmatprep.subr.mxu0 0.0
        %547 = vmatpush1.msra.mxu0 0.0
        %548 = vmatprep.subr.mxu0 0.0
        %549 = vmatpush1.msra.mxu0 0.0
        %550 = vmatprep.subr.mxu0 0.0
        %551 = vmatpush1.msra.mxu0 0.0
        %552 = vmatprep.subr.mxu0 0.0
        %553 = vmatpush1.msra.mxu0 0.0
        %554 = vmatprep.mubr.f32.mxu0 0.0
        %555 = vmatmul.mubr.f32.gmra.mrb[0].mxu0 %v485
        %v556 = vpop.f32.mrb[0].mxu0
        %v557 = vadd.f32 %v481, %v556
        %v558 = vpop.f32.mrb[0].mxu0
        %559 = vmatprep.mubr.f32.mxu0 0.0
        %560 = vmatmul.mubr.f32.gmra.mrb[0].mxu0 %v488
        %v561 = vpop.f32.mrb[0].mxu0
        %v562 = vadd.f32 %v481, %v561
        %v563 = vpop.f32.mrb[0].mxu0
        %564 = vdwg.mxu0
        %v565 = vand.u32 2147483647, %v557
        %v566 = vand.u32 2147483647, %v562
        %v567 = vmul.f32 %v565, 0.5
        %v568 = vmul.f32 %v566, 0.5
        %v569 = vmul.f32 %v565, 0.70710677
        %v570 = vmul.f32 %v566, 0.70710677
        %v571 = verf.f32.pop %v569
        %v572 = verf.f32.pop %v570
        %v573 = vadd.f32 %v571, 1.0
        %v574 = vadd.f32 %v572, 1.0
        %v575 = vmul.f32 %v567, %v573
        %v576 = vmul.f32 %v568, %v574
        %v579 = vand.u32 %v557, 2147483648
        %v580 = vand.u32 %v562, 2147483648
        %v583 = vor.u32 %v575, %v579
        %v584 = vor.u32 %v576, %v580
        %587 = vst.msk [vmem:[#allocation2] sm:$0xff] %vm483, %v583
        %588 = vst.msk [vmem:[#allocation2 + $0x8] sm:$0xff] %vm483, %v584
        %p589 = scmp.eq.s32.totalorder %s26, 2
        // Predicated region
        $region57: #{tpu_custom_call.1} parent=47 // pred_check
          %p590 = pneg %p589
        $region58: #{tpu_custom_call.1} parent=47 // pred_check_branch
          %592 = sbr.rel (%p590) target = $region60
        $region59: #{tpu_custom_call.1} parent=47 // pred_region
          %v593 = vld [vmem:[#allocation2] sm:$0xff]
          %v594 = vld [vmem:[#allocation2 + $0x8] sm:$0xff]
          %v595 = vld [vmem:[%s5] sm:$0xff]
          %v596 = vld [vmem:[%s5 + $0x8] sm:$0xff]
          %v597 = vld [vmem:[%s5 + $0x10] sm:$0xff]
          %v598 = vld [vmem:[%s5 + $0x18] sm:$0xff]
          %v599 = vld [vmem:[%s6] sm:$0x1]
          %v601 = vlaneseq
          %v602 = vshrl.u32 %v601, 7
          %v603 = vsub.s32 0, %v602
          %v604 = vrot.slane %v599, %v603
          %v607 = vsel %vm483, %v593, 0
          %v610 = vsel %vm483, %v594, 0
          %612 = vmatprep.subr.mxu0 0.0
          %613 = vmatpush1.msra.mxu0 %v595
          %614 = vmatprep.subr.mxu0 0.0
          %615 = vmatpush1.msra.mxu0 %v596
          %616 = vmatprep.subr.mxu0 0.0
          %617 = vmatpush1.msra.mxu0 %v597
          %618 = vmatprep.subr.mxu0 0.0
          %619 = vmatpush1.msra.mxu0 %v598
          %620 = vmatprep.subr.mxu0 0.0
          %621 = vmatpush1.msra.mxu0 0.0
          %622 = vmatprep.subr.mxu0 0.0
          %623 = vmatpush1.msra.mxu0 0.0
          %624 = vmatprep.subr.mxu0 0.0
          %625 = vmatpush1.msra.mxu0 0.0
          %626 = vmatprep.subr.mxu0 0.0
          %627 = vmatpush1.msra.mxu0 0.0
          %628 = vmatprep.subr.mxu0 0.0
          %629 = vmatpush1.msra.mxu0 0.0
          %630 = vmatprep.subr.mxu0 0.0
          %631 = vmatpush1.msra.mxu0 0.0
          %632 = vmatprep.subr.mxu0 0.0
          %633 = vmatpush1.msra.mxu0 0.0
          %634 = vmatprep.subr.mxu0 0.0
          %635 = vmatpush1.msra.mxu0 0.0
          %636 = vmatprep.subr.mxu0 0.0
          %637 = vmatpush1.msra.mxu0 0.0
          %638 = vmatprep.subr.mxu0 0.0
          %639 = vmatpush1.msra.mxu0 0.0
          %640 = vmatprep.subr.mxu0 0.0
          %641 = vmatpush1.msra.mxu0 0.0
          %642 = vmatprep.subr.mxu0 0.0
          %643 = vmatpush1.msra.mxu0 0.0
          %644 = vmatprep.subr.mxu0 0.0
          %645 = vmatpush1.msra.mxu0 0.0
          %646 = vmatprep.subr.mxu0 0.0
          %647 = vmatpush1.msra.mxu0 0.0
          %648 = vmatprep.subr.mxu0 0.0
          %649 = vmatpush1.msra.mxu0 0.0
          %650 = vmatprep.subr.mxu0 0.0
          %651 = vmatpush1.msra.mxu0 0.0
          %652 = vmatprep.subr.mxu0 0.0
          %653 = vmatpush1.msra.mxu0 0.0
          %654 = vmatprep.subr.mxu0 0.0
          %655 = vmatpush1.msra.mxu0 0.0
          %656 = vmatprep.subr.mxu0 0.0
          %657 = vmatpush1.msra.mxu0 0.0
          %658 = vmatprep.subr.mxu0 0.0
          %659 = vmatpush1.msra.mxu0 0.0
          %660 = vmatprep.subr.mxu0 0.0
          %661 = vmatpush1.msra.mxu0 0.0
          %662 = vmatprep.subr.mxu0 0.0
          %663 = vmatpush1.msra.mxu0 0.0
          %664 = vmatprep.subr.mxu0 0.0
          %665 = vmatpush1.msra.mxu0 0.0
          %666 = vmatprep.subr.mxu0 0.0
          %667 = vmatpush1.msra.mxu0 0.0
          %668 = vmatprep.subr.mxu0 0.0
          %669 = vmatpush1.msra.mxu0 0.0
          %670 = vmatprep.subr.mxu0 0.0
          %671 = vmatpush1.msra.mxu0 0.0
          %672 = vmatprep.subr.mxu0 0.0
          %673 = vmatpush1.msra.mxu0 0.0
          %674 = vmatprep.subr.mxu0 0.0
          %675 = vmatpush1.msra.mxu0 0.0
          %676 = vmatprep.mubr.f32.mxu0 0.0
          %677 = vmatmul.mubr.f32.gmra.mrb[0].mxu0 %v607
          %v678 = vpop.f32.mrb[0].mxu0
          %v679 = vadd.f32 %v604, %v678
          %v680 = vpop.f32.mrb[0].mxu0
          %681 = vmatprep.mubr.f32.mxu0 0.0
          %682 = vmatmul.mubr.f32.gmra.mrb[0].mxu0 %v610
          %v683 = vpop.f32.mrb[0].mxu0
          %v684 = vadd.f32 %v604, %v683
          %v685 = vpop.f32.mrb[0].mxu0
          %686 = vdwg.mxu0
          %vm687 = vcmask 64512
          %688 = vst.msk [vmem:[%s346] sm:$0xff] %vm687, %v679
          %689 = vst.msk [vmem:[%s346 + $0x8] sm:$0xff] %vm687, %v684
        $region60: #{tpu_custom_call.1} parent=47 // pred_fallthru
          _
        %s690 = smul.u32 2, %s25
        %p691 = scmp.lt.s32.totalorder %s690, 1
        %s692 = scalar_select %p691, %s690, 1
        %s693 = smul.addr %s692, 8
        %s694 = scalar_lea.vmem %s7, %s693
        // Predicated region
        $region61: #{tpu_custom_call.1} parent=47 // pred_check
          %p695 = pneg %p213
        $region62: #{tpu_custom_call.1} parent=47 // pred_check_branch
          %697 = sbr.rel (%p695) target = $region64
        $region63: #{tpu_custom_call.1} parent=47 // pred_region
          %s698 = smul.u32 2, %s25
        $region64: #{tpu_custom_call.1} parent=47 // pred_fallthru
          _
        // Predicated region
        $region65: #{tpu_custom_call.1} parent=47 // pred_check
          %p699 = pneg %p213
        $region66: #{tpu_custom_call.1} parent=47 // pred_check_branch
          %701 = sbr.rel (%p699) target = $region68
        $region67: #{tpu_custom_call.1} parent=47 // pred_region
          %s702 = smul.u32 2, %s25
          %p703 = scmp.lt.s32.totalorder %s702, 1
          %s704 = scalar_select %p703, %s702, 1
          %s705 = smul.addr %s704, 8
          %s706 = scalar_lea.vmem %s7, %s705
        $region68: #{tpu_custom_call.1} parent=47 // pred_fallthru
          _
      $region48: #{tpu_custom_call.1} parent=5 // pred_fallthru
        _
      %p707 = scmp.le.s32.totalorder 2, %s16
      // Predicated region
      $region69: #{tpu_custom_call.1} parent=5 // pred_check
        %p708 = pneg %p707
      $region70: #{tpu_custom_call.1} parent=5 // pred_check_branch
        %710 = sbr.rel (%p708) target = $region72
      $region71: #{tpu_custom_call.1} parent=5 // pred_region
        %s711 = ssub.s32 %s16, 2
      $region72: #{tpu_custom_call.1} parent=5 // pred_fallthru
        _
    $region6: #{tpu_custom_call.1} parent=1 // loop_footer
      %s20 = sadd.s32 1, %s16
    $region7: #{tpu_custom_call.1} parent=1 // loop_footer_branch
      %15 = sbr.rel target = $region3
    $region8: #{tpu_custom_call.1} parent=1 // loop_exit
      _
    %712 = vsyncpa [#allocation4], 1
    %s713 = scalar_lea.sflag [#allocation4], 1
    %714 = vsyncpa %s713, 1

</llo_original>
